<compile_context>
chip_gen: v7x
topology: tpu7x:2x2x1
jax: 0.10.0
libtpu: 0.0.40
codegen_flags: <defaults>
</compile_context>

<pallas_src>
import functools
import math

import jax
import jax.numpy as jnp
from jax import lax
from jax.experimental import pallas as pl
from jax.experimental.pallas import tpu as pltpu

EPS = 1e-5
NEG_INF = -1e30


def _vmem_limit_bytes():
    # ~75% of physical VMEM: ~96 MiB on v5e/v6e (128 MiB), ~48 MiB on v7x (64 MiB).
    try:
        return int(pltpu.get_tpu_info().vmem_capacity_bytes * 0.75)
    except Exception:
        return 48 * 1024 * 1024


def _rmsnorm(x, w):
    # x: (R, D) f32, w: (1, D) f32 -- statistics kept in f32
    ms = jnp.mean(x * x, axis=-1, keepdims=True)
    return x * lax.rsqrt(ms + EPS) * w


def stacked_block_kernel(x_ref, ln1_ref, ln2_ref, wqkv_ref, wo_ref,
                         w13_ref, w2_ref, lnf_ref, out_ref,
                         x_sc, mask_sc, *, batch, seq_len, num_heads, d_ff):
    layer = pl.program_id(0)

    # Load residual stream + build the additive causal mask once, at layer 0.
    @pl.when(layer == 0)
    def _():
        x_sc[...] = x_ref[...].astype(jnp.float32)
        row = lax.broadcasted_iota(jnp.int32, (seq_len, seq_len), 0)
        col = lax.broadcasted_iota(jnp.int32, (seq_len, seq_len), 1)
        mask_sc[...] = jnp.where(col <= row, 0.0, NEG_INF).astype(jnp.float32)

    x = x_sc[...]                                 # (R, D) f32, R = B*L
    mask = mask_sc[...]                           # (L, L) f32 additive mask
    D = x.shape[-1]
    hd = D // num_heads

    # --- x1 = RMSNorm(x) ; fused QKV projection over ALL B*L rows ---
    x1 = _rmsnorm(x, ln1_ref[0])
    qkv = jnp.dot(x1.astype(jnp.bfloat16), wqkv_ref[0],
                  preferred_element_type=jnp.float32)   # (R, 3D) f32
    # 1/sqrt(hd) was folded into the Q columns of wqkv at init time.
    qb = qkv[:, :D].astype(jnp.bfloat16)
    kb = qkv[:, D:2 * D].astype(jnp.bfloat16)
    vb = qkv[:, 2 * D:].astype(jnp.bfloat16)
    wo = wo_ref[0]                                      # (D, D) bf16

    # --- causal attention, W_O folded into the per-head accumulation ---
    rows = []
    for b in range(batch):                              # static loops (tiny B, H)
        r0 = b * seq_len
        acc_b = jnp.zeros((seq_len, D), jnp.float32)
        for h in range(num_heads):
            c = h * hd
            qh = qb[r0:r0 + seq_len, c:c + hd]
            kh = kb[r0:r0 + seq_len, c:c + hd]
            vh = vb[r0:r0 + seq_len, c:c + hd]
            s = lax.dot_general(qh, kh, (((1,), (1,)), ((), ())),
                                preferred_element_type=jnp.float32)  # (L, L)
            s = s + mask
            m = jnp.max(s, axis=-1, keepdims=True)
            p = jnp.exp(s - m)                          # unnormalized probs
            denom = jnp.sum(p, axis=-1, keepdims=True)
            o_h = jnp.dot(p.astype(jnp.bfloat16), vh,
                          preferred_element_type=jnp.float32)        # (L, hd)
            o_h = o_h * pl.reciprocal(denom, approx=True)  # deferred softmax norm
            acc_b += jnp.dot(o_h.astype(jnp.bfloat16), wo[c:c + hd, :],
                             preferred_element_type=jnp.float32)     # fold W_O
        rows.append(acc_b)
    attn_proj = rows[0] if batch == 1 else jnp.concatenate(rows, axis=0)
    x2 = attn_proj + x                                  # (R, D) f32

    # --- x3 = RMSNorm(x2) ; fused SwiGLU FFN over ALL B*L rows ---
    x3 = _rmsnorm(x2, ln2_ref[0])
    ab = jnp.dot(x3.astype(jnp.bfloat16), w13_ref[0],
                 preferred_element_type=jnp.float32)    # (R, 2*d_ff)
    a = ab[:, :d_ff]
    g = ab[:, d_ff:]
    hact = (a * jax.nn.sigmoid(a)) * g                  # f32 VPU/EUP math
    ff = jnp.dot(hact.astype(jnp.bfloat16), w2_ref[0],
                 preferred_element_type=jnp.float32)

    x_new = ff + x2
    x_sc[...] = x_new                                   # carry to next layer

    # Fused final-RMSNorm epilogue: write normalized activation in bf16 so the
    # lm_head is a pure matmul and the inter-kernel HBM traffic is halved.
    @pl.when(layer == pl.num_programs(0) - 1)
    def _():
        out_ref[...] = _rmsnorm(x_new, lnf_ref[...]).astype(out_ref.dtype)


def lm_head_kernel(x_ref, w_ref, out_ref):
    out_ref[...] = jnp.dot(x_ref[...], w_ref[...],
                           preferred_element_type=jnp.float32)


def run_stacked_blocks(x2d, params, num_heads, batch, seq_len):
    R, D = x2d.shape
    NL = params["wqkv"].shape[0]
    d_ff = params["w2"].shape[1]
    kernel = functools.partial(stacked_block_kernel, batch=batch,
                               seq_len=seq_len, num_heads=num_heads, d_ff=d_ff)
    return pl.pallas_call(
        kernel,
        out_shape=jax.ShapeDtypeStruct((R, D), jnp.bfloat16),
        grid=(NL,),                                     # weights streamed once per layer
        in_specs=[
            pl.BlockSpec((R, D), lambda l: (0, 0)),           # x (all rows, resident)
            pl.BlockSpec((1, 1, D), lambda l: (l, 0, 0)),     # ln1[l]
            pl.BlockSpec((1, 1, D), lambda l: (l, 0, 0)),     # ln2[l]
            pl.BlockSpec((1, D, 3 * D), lambda l: (l, 0, 0)),     # wqkv[l]
            pl.BlockSpec((1, D, D), lambda l: (l, 0, 0)),         # wo[l]
            pl.BlockSpec((1, D, 2 * d_ff), lambda l: (l, 0, 0)),  # w13[l]
            pl.BlockSpec((1, d_ff, D), lambda l: (l, 0, 0)),      # w2[l]
            pl.BlockSpec((1, D), lambda l: (0, 0)),           # final RMSNorm scale
        ],
        out_specs=pl.BlockSpec((R, D), lambda l: (0, 0)),
        scratch_shapes=[
            pltpu.VMEM((R, D), jnp.float32),            # residual-stream carry
            pltpu.VMEM((seq_len, seq_len), jnp.float32),  # additive causal mask
        ],
        compiler_params=pltpu.CompilerParams(
            dimension_semantics=("arbitrary",),
            vmem_limit_bytes=_vmem_limit_bytes()),
    )(x2d, params["ln1"], params["ln2"], params["wqkv"], params["wo"],
      params["w13"], params["w2"], params["lnf"])


def run_lm_head(x2d, lm_w):
    R, D = x2d.shape
    V = lm_w.shape[1]
    Vp = ((V + 127) // 128) * 128
    if Vp != V:
        # Zero-pad odd vocabs to a lane multiple (never one giant (D, V) block).
        lm_w = jnp.pad(lm_w, ((0, 0), (0, Vp - V)))
    # Largest lane-dense vocab tile (>=256 fills the v6e/v7x MXU; 128 floor for v5e).
    TV = next(t for t in (2048, 1024, 512, 256, 128) if Vp % t == 0)
    logits = pl.pallas_call(
        lm_head_kernel,
        out_shape=jax.ShapeDtypeStruct((R, Vp), jnp.float32),
        grid=(Vp // TV,),                               # weight streamed once, rows resident
        in_specs=[
            pl.BlockSpec((R, D), lambda v: (0, 0)),
            pl.BlockSpec((D, TV), lambda v: (0, v)),
        ],
        out_specs=pl.BlockSpec((R, TV), lambda v: (0, v)),
        compiler_params=pltpu.CompilerParams(
            dimension_semantics=("parallel",),
            vmem_limit_bytes=_vmem_limit_bytes()),
    )(x2d, lm_w)
    return logits if Vp == V else logits[:, :V]


def init_params(key, vocab_size, context_length, d_model, d_ff, num_layers,
                num_heads):
    ks = iter(jax.random.split(key, 8))
    std = 0.02

    def nrm(shape):
        return jax.random.normal(next(ks), shape, jnp.float32) * std

    wqkv = nrm((num_layers, d_model, 3 * d_model))
    # One-time host-side transform: fold 1/sqrt(head_dim) into the Q columns.
    wqkv = wqkv.at[:, :, :d_model].multiply(1.0 / math.sqrt(d_model // num_heads))

    return {
        "tok_emb": nrm((vocab_size, d_model)),
        "pos_emb": nrm((context_length, d_model)),
        "ln1": jnp.ones((num_layers, 1, d_model), jnp.float32),
        "ln2": jnp.ones((num_layers, 1, d_model), jnp.float32),
        # Fused + stacked weights, stored bf16 for MXU-native matmuls.
        "wqkv": wqkv.astype(jnp.bfloat16),
        "wo": nrm((num_layers, d_model, d_model)).astype(jnp.bfloat16),
        "w13": nrm((num_layers, d_model, 2 * d_ff)).astype(jnp.bfloat16),
        "w2": nrm((num_layers, d_ff, d_model)).astype(jnp.bfloat16),
        "lnf": jnp.ones((1, d_model), jnp.float32),
        "lm_head": nrm((d_model, vocab_size)).astype(jnp.bfloat16),
    }


def transformer_forward(tokens, params, num_heads):
    B, L = tokens.shape
    D = params["tok_emb"].shape[1]
    # Embedding lookups: JAX glue (gather); hot path runs in the Pallas kernels.
    x = params["tok_emb"][tokens] + params["pos_emb"][jnp.arange(L)][None, :, :]
    x2d = x.reshape(B * L, D).astype(jnp.float32)       # flatten (B, L) -> rows
    h = run_stacked_blocks(x2d, params, num_heads, B, L)   # (B*L, D) bf16, ln_final fused
    logits = run_lm_head(h, params["lm_head"])              # (B*L, V) f32
    return logits.reshape(B, L, -1)


if __name__ == "__main__":
    vocab_size = 256
    context_length = 16
    d_model = 32
    d_ff = 64
    num_layers = 2
    num_heads = 4
    B, L = 2, 8

    key = jax.random.PRNGKey(0)
    k_tok, k_par = jax.random.split(key)
    tokens = jax.random.randint(k_tok, (B, L), 0, vocab_size, dtype=jnp.int32)
    params = init_params(k_par, vocab_size, context_length, d_model, d_ff,
                         num_layers, num_heads)

    logits = transformer_forward(tokens, params, num_heads)
    jax.block_until_ready(logits)
    assert logits.shape == (B, L, vocab_size)
    assert bool(jnp.all(jnp.isfinite(logits)))
    print("KERNEL_OK")
</pallas_src>

<mosaic_0001>
module attributes {stable_mosaic.version = 11 : i64} {
  func.func @stacked_block_kernel(%arg0: i32, %arg1: memref<16x32xf32, #tpu.memory_space<vmem>>, %arg2: memref<1x1x32xf32, #tpu.memory_space<vmem>>, %arg3: memref<1x1x32xf32, #tpu.memory_space<vmem>>, %arg4: memref<1x32x96xbf16, #tpu.memory_space<vmem>>, %arg5: memref<1x32x32xbf16, #tpu.memory_space<vmem>>, %arg6: memref<1x32x128xbf16, #tpu.memory_space<vmem>>, %arg7: memref<1x64x32xbf16, #tpu.memory_space<vmem>>, %arg8: memref<1x32xf32, #tpu.memory_space<vmem>>, %arg9: memref<16x32xbf16, #tpu.memory_space<vmem>>, %arg10: memref<16x32xf32, #tpu.memory_space<vmem>>, %arg11: memref<8x8xf32, #tpu.memory_space<vmem>>) attributes {dimension_semantics = [#tpu.dimension_semantics<arbitrary>], iteration_bounds = array<i64: 2>, scalar_prefetch = 0 : i64, scratch_operands = 2 : i64, tpu.core_type = #tpu.core_type<tc>, window_params = [{pipeline_mode = #tpu.pipeline_mode<synchronous>, transform_indices = @transform_0, window_bounds = array<i64: 16, 32>}, {transform_indices = @transform_1, window_bounds = array<i64: 1, 1, 32>}, {transform_indices = @transform_2, window_bounds = array<i64: 1, 1, 32>}, {transform_indices = @transform_3, window_bounds = array<i64: 1, 32, 96>}, {transform_indices = @transform_4, window_bounds = array<i64: 1, 32, 32>}, {transform_indices = @transform_5, window_bounds = array<i64: 1, 32, 128>}, {transform_indices = @transform_6, window_bounds = array<i64: 1, 64, 32>}, {pipeline_mode = #tpu.pipeline_mode<synchronous>, transform_indices = @transform_7, window_bounds = array<i64: 1, 32>}, {pipeline_mode = #tpu.pipeline_mode<synchronous>, transform_indices = @transform_8, window_bounds = array<i64: 16, 32>}]} {
    %c0_i32 = arith.constant 0 : i32
    %0 = arith.cmpi eq, %arg0, %c0_i32 : i32
    %1 = arith.extui %0 : i1 to i32
    %c0_i32_0 = arith.constant 0 : i32
    %2 = arith.cmpi ne, %1, %c0_i32_0 : i32
    scf.if %2 {
      %c0_76 = arith.constant 0 : index
      %c0_77 = arith.constant 0 : index
      %239 = vector.load %arg1[%c0_76, %c0_77] : memref<16x32xf32, #tpu.memory_space<vmem>>, vector<16x32xf32>
      %c0_78 = arith.constant 0 : index
      %c0_79 = arith.constant 0 : index
      %240 = vector.load %arg10[%c0_78, %c0_79] : memref<16x32xf32, #tpu.memory_space<vmem>>, vector<16x32xf32>
      tpu.vector_store %arg10[%c0_78, %c0_79], %239 {strides = array<i32>} : memref<16x32xf32, #tpu.memory_space<vmem>>, vector<16x32xf32>,
      %241 = tpu.iota {dimensions = array<i32: 0>} : vector<8x8xi32>
      %242 = tpu.iota {dimensions = array<i32: 1>} : vector<8x8xi32>
      %243 = arith.cmpi sle, %242, %241 : vector<8x8xi32>
      %cst_80 = arith.constant 0.000000e+00 : f32
      %cst_81 = arith.constant -1.000000e+30 : f32
      %244 = vector.broadcast %cst_80 : f32 to vector<8x8xf32>
      %245 = vector.broadcast %cst_81 : f32 to vector<8x8xf32>
      %246 = arith.select %243, %244, %245 : vector<8x8xi1>, vector<8x8xf32>
      %c0_82 = arith.constant 0 : index
      %c0_83 = arith.constant 0 : index
      %247 = vector.load %arg11[%c0_82, %c0_83] : memref<8x8xf32, #tpu.memory_space<vmem>>, vector<8x8xf32>
      tpu.vector_store %arg11[%c0_82, %c0_83], %246 {strides = array<i32>} : memref<8x8xf32, #tpu.memory_space<vmem>>, vector<8x8xf32>,
    } else {
    }
    %c0 = arith.constant 0 : index
    %c0_1 = arith.constant 0 : index
    %3 = vector.load %arg10[%c0, %c0_1] : memref<16x32xf32, #tpu.memory_space<vmem>>, vector<16x32xf32>
    %c0_2 = arith.constant 0 : index
    %c0_3 = arith.constant 0 : index
    %4 = vector.load %arg11[%c0_2, %c0_3] : memref<8x8xf32, #tpu.memory_space<vmem>>, vector<8x8xf32>
    %c0_4 = arith.constant 0 : index
    %c0_5 = arith.constant 0 : index
    %c0_6 = arith.constant 0 : index
    %5 = vector.load %arg2[%c0_4, %c0_5, %c0_6] : memref<1x1x32xf32, #tpu.memory_space<vmem>>, vector<1x1x32xf32>
    %6 = vector.shape_cast %5 : vector<1x1x32xf32> to vector<1x32xf32>
    %7 = arith.mulf %3, %3 : vector<16x32xf32>
    %cst = arith.constant dense<0.000000e+00> : vector<16xf32>
    %8 = vector.multi_reduction <add>, %7, %cst [1] : vector<16x32xf32> to vector<16xf32>
    %9 = vector.shape_cast %8 : vector<16xf32> to vector<16x1xf32>
    %cst_7 = arith.constant 3.200000e+01 : f32
    %10 = vector.broadcast %cst_7 : f32 to vector<16x1xf32>
    %11 = arith.divf %9, %10 : vector<16x1xf32>
    %cst_8 = arith.constant 9.99999974E-6 : f32
    %12 = vector.broadcast %cst_8 : f32 to vector<16x1xf32>
    %13 = arith.addf %11, %12 : vector<16x1xf32>
    %14 = math.rsqrt %13 : vector<16x1xf32>
    %15 = vector.broadcast %14 : vector<16x1xf32> to vector<16x32xf32>
    %16 = arith.mulf %3, %15 : vector<16x32xf32>
    %17 = vector.broadcast %6 : vector<1x32xf32> to vector<16x32xf32>
    %18 = arith.mulf %16, %17 : vector<16x32xf32>
    %19 = arith.truncf %18 : vector<16x32xf32> to vector<16x32xbf16>
    %c0_9 = arith.constant 0 : index
    %c0_10 = arith.constant 0 : index
    %c0_11 = arith.constant 0 : index
    %20 = vector.load %arg4[%c0_9, %c0_10, %c0_11] : memref<1x32x96xbf16, #tpu.memory_space<vmem>>, vector<1x32x96xbf16>
    %21 = vector.shape_cast %20 : vector<1x32x96xbf16> to vector<32x96xbf16>
    %cst_12 = arith.constant dense<0.000000e+00> : vector<16x96xf32>
    %22 = tpu.matmul %19, %21, %cst_12 {dimension_numbers = #tpu.dot_dimension_numbers<[1], [0], [0], [1], [0, 0, 1, 1], [], []>} : vector<16x32xbf16>, vector<32x96xbf16>, vector<16x96xf32> -> vector<16x96xf32>
    %23 = vector.extract_strided_slice %22 {offsets = [0, 0], sizes = [16, 32], strides = [1, 1]} : vector<16x96xf32> to vector<16x32xf32>
    %24 = arith.truncf %23 : vector<16x32xf32> to vector<16x32xbf16>
    %25 = vector.extract_strided_slice %22 {offsets = [0, 32], sizes = [16, 32], strides = [1, 1]} : vector<16x96xf32> to vector<16x32xf32>
    %26 = arith.truncf %25 : vector<16x32xf32> to vector<16x32xbf16>
    %27 = vector.extract_strided_slice %22 {offsets = [0, 64], sizes = [16, 32], strides = [1, 1]} : vector<16x96xf32> to vector<16x32xf32>
    %28 = arith.truncf %27 : vector<16x32xf32> to vector<16x32xbf16>
    %c0_13 = arith.constant 0 : index
    %c0_14 = arith.constant 0 : index
    %c0_15 = arith.constant 0 : index
    %29 = vector.load %arg5[%c0_13, %c0_14, %c0_15] : memref<1x32x32xbf16, #tpu.memory_space<vmem>>, vector<1x32x32xbf16>
    %30 = vector.shape_cast %29 : vector<1x32x32xbf16> to vector<32x32xbf16>
    %cst_16 = arith.constant 0.000000e+00 : f32
    %31 = vector.broadcast %cst_16 : f32 to vector<8x32xf32>
    %32 = vector.extract_strided_slice %24 {offsets = [0, 0], sizes = [8, 8], strides = [1, 1]} : vector<16x32xbf16> to vector<8x8xbf16>
    %33 = vector.extract_strided_slice %26 {offsets = [0, 0], sizes = [8, 8], strides = [1, 1]} : vector<16x32xbf16> to vector<8x8xbf16>
    %34 = vector.extract_strided_slice %28 {offsets = [0, 0], sizes = [8, 8], strides = [1, 1]} : vector<16x32xbf16> to vector<8x8xbf16>
    %cst_17 = arith.constant dense<0.000000e+00> : vector<8x8xf32>
    %35 = tpu.matmul %32, %33, %cst_17 {dimension_numbers = #tpu.dot_dimension_numbers<[1], [1], [0], [0], [0, 0, 1, 0], [], []>} : vector<8x8xbf16>, vector<8x8xbf16>, vector<8x8xf32> -> vector<8x8xf32>
    %36 = arith.addf %35, %4 : vector<8x8xf32>
    %cst_18 = arith.constant dense<0xFF800000> : vector<8xf32>
    %37 = vector.multi_reduction <maximumf>, %36, %cst_18 [1] : vector<8x8xf32> to vector<8xf32>
    %38 = vector.shape_cast %37 : vector<8xf32> to vector<8x1xf32>
    %39 = vector.broadcast %38 : vector<8x1xf32> to vector<8x8xf32>
    %40 = arith.subf %36, %39 : vector<8x8xf32>
    %41 = math.exp %40 : vector<8x8xf32>
    %cst_19 = arith.constant dense<0.000000e+00> : vector<8xf32>
    %42 = vector.multi_reduction <add>, %41, %cst_19 [1] : vector<8x8xf32> to vector<8xf32>
    %43 = vector.shape_cast %42 : vector<8xf32> to vector<8x1xf32>
    %44 = arith.truncf %41 : vector<8x8xf32> to vector<8x8xbf16>
    %cst_20 = arith.constant dense<0.000000e+00> : vector<8x8xf32>
    %45 = tpu.matmul %44, %34, %cst_20 {dimension_numbers = #tpu.dot_dimension_numbers<[1], [0], [0], [1], [0, 0, 1, 1], [], []>} : vector<8x8xbf16>, vector<8x8xbf16>, vector<8x8xf32> -> vector<8x8xf32>
    %46 = tpu.reciprocal %43 {approx = true} : vector<8x1xf32> -> vector<8x1xf32>
    %47 = vector.broadcast %46 : vector<8x1xf32> to vector<8x8xf32>
    %48 = arith.mulf %45, %47 : vector<8x8xf32>
    %49 = arith.truncf %48 : vector<8x8xf32> to vector<8x8xbf16>
    %50 = vector.extract_strided_slice %30 {offsets = [0, 0], sizes = [8, 32], strides = [1, 1]} : vector<32x32xbf16> to vector<8x32xbf16>
    %cst_21 = arith.constant dense<0.000000e+00> : vector<8x32xf32>
    %51 = tpu.matmul %49, %50, %cst_21 {dimension_numbers = #tpu.dot_dimension_numbers<[1], [0], [0], [1], [0, 0, 1, 1], [], []>} : vector<8x8xbf16>, vector<8x32xbf16>, vector<8x32xf32> -> vector<8x32xf32>
    %52 = arith.addf %31, %51 : vector<8x32xf32>
    %53 = vector.extract_strided_slice %24 {offsets = [0, 8], sizes = [8, 8], strides = [1, 1]} : vector<16x32xbf16> to vector<8x8xbf16>
    %54 = vector.extract_strided_slice %26 {offsets = [0, 8], sizes = [8, 8], strides = [1, 1]} : vector<16x32xbf16> to vector<8x8xbf16>
    %55 = vector.extract_strided_slice %28 {offsets = [0, 8], sizes = [8, 8], strides = [1, 1]} : vector<16x32xbf16> to vector<8x8xbf16>
    %cst_22 = arith.constant dense<0.000000e+00> : vector<8x8xf32>
    %56 = tpu.matmul %53, %54, %cst_22 {dimension_numbers = #tpu.dot_dimension_numbers<[1], [1], [0], [0], [0, 0, 1, 0], [], []>} : vector<8x8xbf16>, vector<8x8xbf16>, vector<8x8xf32> -> vector<8x8xf32>
    %57 = arith.addf %56, %4 : vector<8x8xf32>
    %cst_23 = arith.constant dense<0xFF800000> : vector<8xf32>
    %58 = vector.multi_reduction <maximumf>, %57, %cst_23 [1] : vector<8x8xf32> to vector<8xf32>
    %59 = vector.shape_cast %58 : vector<8xf32> to vector<8x1xf32>
    %60 = vector.broadcast %59 : vector<8x1xf32> to vector<8x8xf32>
    %61 = arith.subf %57, %60 : vector<8x8xf32>
    %62 = math.exp %61 : vector<8x8xf32>
    %cst_24 = arith.constant dense<0.000000e+00> : vector<8xf32>
    %63 = vector.multi_reduction <add>, %62, %cst_24 [1] : vector<8x8xf32> to vector<8xf32>
    %64 = vector.shape_cast %63 : vector<8xf32> to vector<8x1xf32>
    %65 = arith.truncf %62 : vector<8x8xf32> to vector<8x8xbf16>
    %cst_25 = arith.constant dense<0.000000e+00> : vector<8x8xf32>
    %66 = tpu.matmul %65, %55, %cst_25 {dimension_numbers = #tpu.dot_dimension_numbers<[1], [0], [0], [1], [0, 0, 1, 1], [], []>} : vector<8x8xbf16>, vector<8x8xbf16>, vector<8x8xf32> -> vector<8x8xf32>
    %67 = tpu.reciprocal %64 {approx = true} : vector<8x1xf32> -> vector<8x1xf32>
    %68 = vector.broadcast %67 : vector<8x1xf32> to vector<8x8xf32>
    %69 = arith.mulf %66, %68 : vector<8x8xf32>
    %70 = arith.truncf %69 : vector<8x8xf32> to vector<8x8xbf16>
    %71 = vector.extract_strided_slice %30 {offsets = [8, 0], sizes = [8, 32], strides = [1, 1]} : vector<32x32xbf16> to vector<8x32xbf16>
    %cst_26 = arith.constant dense<0.000000e+00> : vector<8x32xf32>
    %72 = tpu.matmul %70, %71, %cst_26 {dimension_numbers = #tpu.dot_dimension_numbers<[1], [0], [0], [1], [0, 0, 1, 1], [], []>} : vector<8x8xbf16>, vector<8x32xbf16>, vector<8x32xf32> -> vector<8x32xf32>
    %73 = arith.addf %52, %72 : vector<8x32xf32>
    %74 = vector.extract_strided_slice %24 {offsets = [0, 16], sizes = [8, 8], strides = [1, 1]} : vector<16x32xbf16> to vector<8x8xbf16>
    %75 = vector.extract_strided_slice %26 {offsets = [0, 16], sizes = [8, 8], strides = [1, 1]} : vector<16x32xbf16> to vector<8x8xbf16>
    %76 = vector.extract_strided_slice %28 {offsets = [0, 16], sizes = [8, 8], strides = [1, 1]} : vector<16x32xbf16> to vector<8x8xbf16>
    %cst_27 = arith.constant dense<0.000000e+00> : vector<8x8xf32>
    %77 = tpu.matmul %74, %75, %cst_27 {dimension_numbers = #tpu.dot_dimension_numbers<[1], [1], [0], [0], [0, 0, 1, 0], [], []>} : vector<8x8xbf16>, vector<8x8xbf16>, vector<8x8xf32> -> vector<8x8xf32>
    %78 = arith.addf %77, %4 : vector<8x8xf32>
    %cst_28 = arith.constant dense<0xFF800000> : vector<8xf32>
    %79 = vector.multi_reduction <maximumf>, %78, %cst_28 [1] : vector<8x8xf32> to vector<8xf32>
    %80 = vector.shape_cast %79 : vector<8xf32> to vector<8x1xf32>
    %81 = vector.broadcast %80 : vector<8x1xf32> to vector<8x8xf32>
    %82 = arith.subf %78, %81 : vector<8x8xf32>
    %83 = math.exp %82 : vector<8x8xf32>
    %cst_29 = arith.constant dense<0.000000e+00> : vector<8xf32>
    %84 = vector.multi_reduction <add>, %83, %cst_29 [1] : vector<8x8xf32> to vector<8xf32>
    %85 = vector.shape_cast %84 : vector<8xf32> to vector<8x1xf32>
    %86 = arith.truncf %83 : vector<8x8xf32> to vector<8x8xbf16>
    %cst_30 = arith.constant dense<0.000000e+00> : vector<8x8xf32>
    %87 = tpu.matmul %86, %76, %cst_30 {dimension_numbers = #tpu.dot_dimension_numbers<[1], [0], [0], [1], [0, 0, 1, 1], [], []>} : vector<8x8xbf16>, vector<8x8xbf16>, vector<8x8xf32> -> vector<8x8xf32>
    %88 = tpu.reciprocal %85 {approx = true} : vector<8x1xf32> -> vector<8x1xf32>
    %89 = vector.broadcast %88 : vector<8x1xf32> to vector<8x8xf32>
    %90 = arith.mulf %87, %89 : vector<8x8xf32>
    %91 = arith.truncf %90 : vector<8x8xf32> to vector<8x8xbf16>
    %92 = vector.extract_strided_slice %30 {offsets = [16, 0], sizes = [8, 32], strides = [1, 1]} : vector<32x32xbf16> to vector<8x32xbf16>
    %cst_31 = arith.constant dense<0.000000e+00> : vector<8x32xf32>
    %93 = tpu.matmul %91, %92, %cst_31 {dimension_numbers = #tpu.dot_dimension_numbers<[1], [0], [0], [1], [0, 0, 1, 1], [], []>} : vector<8x8xbf16>, vector<8x32xbf16>, vector<8x32xf32> -> vector<8x32xf32>
    %94 = arith.addf %73, %93 : vector<8x32xf32>
    %95 = vector.extract_strided_slice %24 {offsets = [0, 24], sizes = [8, 8], strides = [1, 1]} : vector<16x32xbf16> to vector<8x8xbf16>
    %96 = vector.extract_strided_slice %26 {offsets = [0, 24], sizes = [8, 8], strides = [1, 1]} : vector<16x32xbf16> to vector<8x8xbf16>
    %97 = vector.extract_strided_slice %28 {offsets = [0, 24], sizes = [8, 8], strides = [1, 1]} : vector<16x32xbf16> to vector<8x8xbf16>
    %cst_32 = arith.constant dense<0.000000e+00> : vector<8x8xf32>
    %98 = tpu.matmul %95, %96, %cst_32 {dimension_numbers = #tpu.dot_dimension_numbers<[1], [1], [0], [0], [0, 0, 1, 0], [], []>} : vector<8x8xbf16>, vector<8x8xbf16>, vector<8x8xf32> -> vector<8x8xf32>
    %99 = arith.addf %98, %4 : vector<8x8xf32>
    %cst_33 = arith.constant dense<0xFF800000> : vector<8xf32>
    %100 = vector.multi_reduction <maximumf>, %99, %cst_33 [1] : vector<8x8xf32> to vector<8xf32>
    %101 = vector.shape_cast %100 : vector<8xf32> to vector<8x1xf32>
    %102 = vector.broadcast %101 : vector<8x1xf32> to vector<8x8xf32>
    %103 = arith.subf %99, %102 : vector<8x8xf32>
    %104 = math.exp %103 : vector<8x8xf32>
    %cst_34 = arith.constant dense<0.000000e+00> : vector<8xf32>
    %105 = vector.multi_reduction <add>, %104, %cst_34 [1] : vector<8x8xf32> to vector<8xf32>
    %106 = vector.shape_cast %105 : vector<8xf32> to vector<8x1xf32>
    %107 = arith.truncf %104 : vector<8x8xf32> to vector<8x8xbf16>
    %cst_35 = arith.constant dense<0.000000e+00> : vector<8x8xf32>
    %108 = tpu.matmul %107, %97, %cst_35 {dimension_numbers = #tpu.dot_dimension_numbers<[1], [0], [0], [1], [0, 0, 1, 1], [], []>} : vector<8x8xbf16>, vector<8x8xbf16>, vector<8x8xf32> -> vector<8x8xf32>
    %109 = tpu.reciprocal %106 {approx = true} : vector<8x1xf32> -> vector<8x1xf32>
    %110 = vector.broadcast %109 : vector<8x1xf32> to vector<8x8xf32>
    %111 = arith.mulf %108, %110 : vector<8x8xf32>
    %112 = arith.truncf %111 : vector<8x8xf32> to vector<8x8xbf16>
    %113 = vector.extract_strided_slice %30 {offsets = [24, 0], sizes = [8, 32], strides = [1, 1]} : vector<32x32xbf16> to vector<8x32xbf16>
    %cst_36 = arith.constant dense<0.000000e+00> : vector<8x32xf32>
    %114 = tpu.matmul %112, %113, %cst_36 {dimension_numbers = #tpu.dot_dimension_numbers<[1], [0], [0], [1], [0, 0, 1, 1], [], []>} : vector<8x8xbf16>, vector<8x32xbf16>, vector<8x32xf32> -> vector<8x32xf32>
    %115 = arith.addf %94, %114 : vector<8x32xf32>
    %cst_37 = arith.constant 0.000000e+00 : f32
    %116 = vector.broadcast %cst_37 : f32 to vector<8x32xf32>
    %117 = vector.extract_strided_slice %24 {offsets = [8, 0], sizes = [8, 8], strides = [1, 1]} : vector<16x32xbf16> to vector<8x8xbf16>
    %118 = vector.extract_strided_slice %26 {offsets = [8, 0], sizes = [8, 8], strides = [1, 1]} : vector<16x32xbf16> to vector<8x8xbf16>
    %119 = vector.extract_strided_slice %28 {offsets = [8, 0], sizes = [8, 8], strides = [1, 1]} : vector<16x32xbf16> to vector<8x8xbf16>
    %cst_38 = arith.constant dense<0.000000e+00> : vector<8x8xf32>
    %120 = tpu.matmul %117, %118, %cst_38 {dimension_numbers = #tpu.dot_dimension_numbers<[1], [1], [0], [0], [0, 0, 1, 0], [], []>} : vector<8x8xbf16>, vector<8x8xbf16>, vector<8x8xf32> -> vector<8x8xf32>
    %121 = arith.addf %120, %4 : vector<8x8xf32>
    %cst_39 = arith.constant dense<0xFF800000> : vector<8xf32>
    %122 = vector.multi_reduction <maximumf>, %121, %cst_39 [1] : vector<8x8xf32> to vector<8xf32>
    %123 = vector.shape_cast %122 : vector<8xf32> to vector<8x1xf32>
    %124 = vector.broadcast %123 : vector<8x1xf32> to vector<8x8xf32>
    %125 = arith.subf %121, %124 : vector<8x8xf32>
    %126 = math.exp %125 : vector<8x8xf32>
    %cst_40 = arith.constant dense<0.000000e+00> : vector<8xf32>
    %127 = vector.multi_reduction <add>, %126, %cst_40 [1] : vector<8x8xf32> to vector<8xf32>
    %128 = vector.shape_cast %127 : vector<8xf32> to vector<8x1xf32>
    %129 = arith.truncf %126 : vector<8x8xf32> to vector<8x8xbf16>
    %cst_41 = arith.constant dense<0.000000e+00> : vector<8x8xf32>
    %130 = tpu.matmul %129, %119, %cst_41 {dimension_numbers = #tpu.dot_dimension_numbers<[1], [0], [0], [1], [0, 0, 1, 1], [], []>} : vector<8x8xbf16>, vector<8x8xbf16>, vector<8x8xf32> -> vector<8x8xf32>
    %131 = tpu.reciprocal %128 {approx = true} : vector<8x1xf32> -> vector<8x1xf32>
    %132 = vector.broadcast %131 : vector<8x1xf32> to vector<8x8xf32>
    %133 = arith.mulf %130, %132 : vector<8x8xf32>
    %134 = arith.truncf %133 : vector<8x8xf32> to vector<8x8xbf16>
    %135 = vector.extract_strided_slice %30 {offsets = [0, 0], sizes = [8, 32], strides = [1, 1]} : vector<32x32xbf16> to vector<8x32xbf16>
    %cst_42 = arith.constant dense<0.000000e+00> : vector<8x32xf32>
    %136 = tpu.matmul %134, %135, %cst_42 {dimension_numbers = #tpu.dot_dimension_numbers<[1], [0], [0], [1], [0, 0, 1, 1], [], []>} : vector<8x8xbf16>, vector<8x32xbf16>, vector<8x32xf32> -> vector<8x32xf32>
    %137 = arith.addf %116, %136 : vector<8x32xf32>
    %138 = vector.extract_strided_slice %24 {offsets = [8, 8], sizes = [8, 8], strides = [1, 1]} : vector<16x32xbf16> to vector<8x8xbf16>
    %139 = vector.extract_strided_slice %26 {offsets = [8, 8], sizes = [8, 8], strides = [1, 1]} : vector<16x32xbf16> to vector<8x8xbf16>
    %140 = vector.extract_strided_slice %28 {offsets = [8, 8], sizes = [8, 8], strides = [1, 1]} : vector<16x32xbf16> to vector<8x8xbf16>
    %cst_43 = arith.constant dense<0.000000e+00> : vector<8x8xf32>
    %141 = tpu.matmul %138, %139, %cst_43 {dimension_numbers = #tpu.dot_dimension_numbers<[1], [1], [0], [0], [0, 0, 1, 0], [], []>} : vector<8x8xbf16>, vector<8x8xbf16>, vector<8x8xf32> -> vector<8x8xf32>
    %142 = arith.addf %141, %4 : vector<8x8xf32>
    %cst_44 = arith.constant dense<0xFF800000> : vector<8xf32>
    %143 = vector.multi_reduction <maximumf>, %142, %cst_44 [1] : vector<8x8xf32> to vector<8xf32>
    %144 = vector.shape_cast %143 : vector<8xf32> to vector<8x1xf32>
    %145 = vector.broadcast %144 : vector<8x1xf32> to vector<8x8xf32>
    %146 = arith.subf %142, %145 : vector<8x8xf32>
    %147 = math.exp %146 : vector<8x8xf32>
    %cst_45 = arith.constant dense<0.000000e+00> : vector<8xf32>
    %148 = vector.multi_reduction <add>, %147, %cst_45 [1] : vector<8x8xf32> to vector<8xf32>
    %149 = vector.shape_cast %148 : vector<8xf32> to vector<8x1xf32>
    %150 = arith.truncf %147 : vector<8x8xf32> to vector<8x8xbf16>
    %cst_46 = arith.constant dense<0.000000e+00> : vector<8x8xf32>
    %151 = tpu.matmul %150, %140, %cst_46 {dimension_numbers = #tpu.dot_dimension_numbers<[1], [0], [0], [1], [0, 0, 1, 1], [], []>} : vector<8x8xbf16>, vector<8x8xbf16>, vector<8x8xf32> -> vector<8x8xf32>
    %152 = tpu.reciprocal %149 {approx = true} : vector<8x1xf32> -> vector<8x1xf32>
    %153 = vector.broadcast %152 : vector<8x1xf32> to vector<8x8xf32>
    %154 = arith.mulf %151, %153 : vector<8x8xf32>
    %155 = arith.truncf %154 : vector<8x8xf32> to vector<8x8xbf16>
    %156 = vector.extract_strided_slice %30 {offsets = [8, 0], sizes = [8, 32], strides = [1, 1]} : vector<32x32xbf16> to vector<8x32xbf16>
    %cst_47 = arith.constant dense<0.000000e+00> : vector<8x32xf32>
    %157 = tpu.matmul %155, %156, %cst_47 {dimension_numbers = #tpu.dot_dimension_numbers<[1], [0], [0], [1], [0, 0, 1, 1], [], []>} : vector<8x8xbf16>, vector<8x32xbf16>, vector<8x32xf32> -> vector<8x32xf32>
    %158 = arith.addf %137, %157 : vector<8x32xf32>
    %159 = vector.extract_strided_slice %24 {offsets = [8, 16], sizes = [8, 8], strides = [1, 1]} : vector<16x32xbf16> to vector<8x8xbf16>
    %160 = vector.extract_strided_slice %26 {offsets = [8, 16], sizes = [8, 8], strides = [1, 1]} : vector<16x32xbf16> to vector<8x8xbf16>
    %161 = vector.extract_strided_slice %28 {offsets = [8, 16], sizes = [8, 8], strides = [1, 1]} : vector<16x32xbf16> to vector<8x8xbf16>
    %cst_48 = arith.constant dense<0.000000e+00> : vector<8x8xf32>
    %162 = tpu.matmul %159, %160, %cst_48 {dimension_numbers = #tpu.dot_dimension_numbers<[1], [1], [0], [0], [0, 0, 1, 0], [], []>} : vector<8x8xbf16>, vector<8x8xbf16>, vector<8x8xf32> -> vector<8x8xf32>
    %163 = arith.addf %162, %4 : vector<8x8xf32>
    %cst_49 = arith.constant dense<0xFF800000> : vector<8xf32>
    %164 = vector.multi_reduction <maximumf>, %163, %cst_49 [1] : vector<8x8xf32> to vector<8xf32>
    %165 = vector.shape_cast %164 : vector<8xf32> to vector<8x1xf32>
    %166 = vector.broadcast %165 : vector<8x1xf32> to vector<8x8xf32>
    %167 = arith.subf %163, %166 : vector<8x8xf32>
    %168 = math.exp %167 : vector<8x8xf32>
    %cst_50 = arith.constant dense<0.000000e+00> : vector<8xf32>
    %169 = vector.multi_reduction <add>, %168, %cst_50 [1] : vector<8x8xf32> to vector<8xf32>
    %170 = vector.shape_cast %169 : vector<8xf32> to vector<8x1xf32>
    %171 = arith.truncf %168 : vector<8x8xf32> to vector<8x8xbf16>
    %cst_51 = arith.constant dense<0.000000e+00> : vector<8x8xf32>
    %172 = tpu.matmul %171, %161, %cst_51 {dimension_numbers = #tpu.dot_dimension_numbers<[1], [0], [0], [1], [0, 0, 1, 1], [], []>} : vector<8x8xbf16>, vector<8x8xbf16>, vector<8x8xf32> -> vector<8x8xf32>
    %173 = tpu.reciprocal %170 {approx = true} : vector<8x1xf32> -> vector<8x1xf32>
    %174 = vector.broadcast %173 : vector<8x1xf32> to vector<8x8xf32>
    %175 = arith.mulf %172, %174 : vector<8x8xf32>
    %176 = arith.truncf %175 : vector<8x8xf32> to vector<8x8xbf16>
    %177 = vector.extract_strided_slice %30 {offsets = [16, 0], sizes = [8, 32], strides = [1, 1]} : vector<32x32xbf16> to vector<8x32xbf16>
    %cst_52 = arith.constant dense<0.000000e+00> : vector<8x32xf32>
    %178 = tpu.matmul %176, %177, %cst_52 {dimension_numbers = #tpu.dot_dimension_numbers<[1], [0], [0], [1], [0, 0, 1, 1], [], []>} : vector<8x8xbf16>, vector<8x32xbf16>, vector<8x32xf32> -> vector<8x32xf32>
    %179 = arith.addf %158, %178 : vector<8x32xf32>
    %180 = vector.extract_strided_slice %24 {offsets = [8, 24], sizes = [8, 8], strides = [1, 1]} : vector<16x32xbf16> to vector<8x8xbf16>
    %181 = vector.extract_strided_slice %26 {offsets = [8, 24], sizes = [8, 8], strides = [1, 1]} : vector<16x32xbf16> to vector<8x8xbf16>
    %182 = vector.extract_strided_slice %28 {offsets = [8, 24], sizes = [8, 8], strides = [1, 1]} : vector<16x32xbf16> to vector<8x8xbf16>
    %cst_53 = arith.constant dense<0.000000e+00> : vector<8x8xf32>
    %183 = tpu.matmul %180, %181, %cst_53 {dimension_numbers = #tpu.dot_dimension_numbers<[1], [1], [0], [0], [0, 0, 1, 0], [], []>} : vector<8x8xbf16>, vector<8x8xbf16>, vector<8x8xf32> -> vector<8x8xf32>
    %184 = arith.addf %183, %4 : vector<8x8xf32>
    %cst_54 = arith.constant dense<0xFF800000> : vector<8xf32>
    %185 = vector.multi_reduction <maximumf>, %184, %cst_54 [1] : vector<8x8xf32> to vector<8xf32>
    %186 = vector.shape_cast %185 : vector<8xf32> to vector<8x1xf32>
    %187 = vector.broadcast %186 : vector<8x1xf32> to vector<8x8xf32>
    %188 = arith.subf %184, %187 : vector<8x8xf32>
    %189 = math.exp %188 : vector<8x8xf32>
    %cst_55 = arith.constant dense<0.000000e+00> : vector<8xf32>
    %190 = vector.multi_reduction <add>, %189, %cst_55 [1] : vector<8x8xf32> to vector<8xf32>
    %191 = vector.shape_cast %190 : vector<8xf32> to vector<8x1xf32>
    %192 = arith.truncf %189 : vector<8x8xf32> to vector<8x8xbf16>
    %cst_56 = arith.constant dense<0.000000e+00> : vector<8x8xf32>
    %193 = tpu.matmul %192, %182, %cst_56 {dimension_numbers = #tpu.dot_dimension_numbers<[1], [0], [0], [1], [0, 0, 1, 1], [], []>} : vector<8x8xbf16>, vector<8x8xbf16>, vector<8x8xf32> -> vector<8x8xf32>
    %194 = tpu.reciprocal %191 {approx = true} : vector<8x1xf32> -> vector<8x1xf32>
    %195 = vector.broadcast %194 : vector<8x1xf32> to vector<8x8xf32>
    %196 = arith.mulf %193, %195 : vector<8x8xf32>
    %197 = arith.truncf %196 : vector<8x8xf32> to vector<8x8xbf16>
    %198 = vector.extract_strided_slice %30 {offsets = [24, 0], sizes = [8, 32], strides = [1, 1]} : vector<32x32xbf16> to vector<8x32xbf16>
    %cst_57 = arith.constant dense<0.000000e+00> : vector<8x32xf32>
    %199 = tpu.matmul %197, %198, %cst_57 {dimension_numbers = #tpu.dot_dimension_numbers<[1], [0], [0], [1], [0, 0, 1, 1], [], []>} : vector<8x8xbf16>, vector<8x32xbf16>, vector<8x32xf32> -> vector<8x32xf32>
    %200 = arith.addf %179, %199 : vector<8x32xf32>
    %201 = tpu.concatenate %115, %200 in 0 : vector<8x32xf32>, vector<8x32xf32> -> vector<16x32xf32>
    %202 = arith.addf %201, %3 : vector<16x32xf32>
    %c0_58 = arith.constant 0 : index
    %c0_59 = arith.constant 0 : index
    %c0_60 = arith.constant 0 : index
    %203 = vector.load %arg3[%c0_58, %c0_59, %c0_60] : memref<1x1x32xf32, #tpu.memory_space<vmem>>, vector<1x1x32xf32>
    %204 = vector.shape_cast %203 : vector<1x1x32xf32> to vector<1x32xf32>
    %205 = arith.mulf %202, %202 : vector<16x32xf32>
    %cst_61 = arith.constant dense<0.000000e+00> : vector<16xf32>
    %206 = vector.multi_reduction <add>, %205, %cst_61 [1] : vector<16x32xf32> to vector<16xf32>
    %207 = vector.shape_cast %206 : vector<16xf32> to vector<16x1xf32>
    %cst_62 = arith.constant 3.200000e+01 : f32
    %208 = vector.broadcast %cst_62 : f32 to vector<16x1xf32>
    %209 = arith.divf %207, %208 : vector<16x1xf32>
    %cst_63 = arith.constant 9.99999974E-6 : f32
    %210 = vector.broadcast %cst_63 : f32 to vector<16x1xf32>
    %211 = arith.addf %209, %210 : vector<16x1xf32>
    %212 = math.rsqrt %211 : vector<16x1xf32>
    %213 = vector.broadcast %212 : vector<16x1xf32> to vector<16x32xf32>
    %214 = arith.mulf %202, %213 : vector<16x32xf32>
    %215 = vector.broadcast %204 : vector<1x32xf32> to vector<16x32xf32>
    %216 = arith.mulf %214, %215 : vector<16x32xf32>
    %217 = arith.truncf %216 : vector<16x32xf32> to vector<16x32xbf16>
    %c0_64 = arith.constant 0 : index
    %c0_65 = arith.constant 0 : index
    %c0_66 = arith.constant 0 : index
    %218 = vector.load %arg6[%c0_64, %c0_65, %c0_66] : memref<1x32x128xbf16, #tpu.memory_space<vmem>>, vector<1x32x128xbf16>
    %219 = vector.shape_cast %218 : vector<1x32x128xbf16> to vector<32x128xbf16>
    %cst_67 = arith.constant dense<0.000000e+00> : vector<16x128xf32>
    %220 = tpu.matmul %217, %219, %cst_67 {dimension_numbers = #tpu.dot_dimension_numbers<[1], [0], [0], [1], [0, 0, 1, 1], [], []>} : vector<16x32xbf16>, vector<32x128xbf16>, vector<16x128xf32> -> vector<16x128xf32>
    %221 = vector.extract_strided_slice %220 {offsets = [0, 0], sizes = [16, 64], strides = [1, 1]} : vector<16x128xf32> to vector<16x64xf32>
    %222 = vector.extract_strided_slice %220 {offsets = [0, 64], sizes = [16, 64], strides = [1, 1]} : vector<16x128xf32> to vector<16x64xf32>
    %223 = arith.negf %221 : vector<16x64xf32>
    %224 = math.exp %223 : vector<16x64xf32>
    %cst_68 = arith.constant 1.000000e+00 : f32
    %225 = vector.broadcast %cst_68 : f32 to vector<16x64xf32>
    %226 = arith.addf %225, %224 : vector<16x64xf32>
    %227 = arith.divf %225, %226 : vector<16x64xf32>
    %228 = arith.mulf %221, %227 : vector<16x64xf32>
    %229 = arith.mulf %228, %222 : vector<16x64xf32>
    %230 = arith.truncf %229 : vector<16x64xf32> to vector<16x64xbf16>
    %c0_69 = arith.constant 0 : index
    %c0_70 = arith.constant 0 : index
    %c0_71 = arith.constant 0 : index
    %231 = vector.load %arg7[%c0_69, %c0_70, %c0_71] : memref<1x64x32xbf16, #tpu.memory_space<vmem>>, vector<1x64x32xbf16>
    %232 = vector.shape_cast %231 : vector<1x64x32xbf16> to vector<64x32xbf16>
    %cst_72 = arith.constant dense<0.000000e+00> : vector<16x32xf32>
    %233 = tpu.matmul %230, %232, %cst_72 {dimension_numbers = #tpu.dot_dimension_numbers<[1], [0], [0], [1], [0, 0, 1, 1], [], []>} : vector<16x64xbf16>, vector<64x32xbf16>, vector<16x32xf32> -> vector<16x32xf32>
    %234 = arith.addf %233, %202 : vector<16x32xf32>
    %c0_73 = arith.constant 0 : index
    %c0_74 = arith.constant 0 : index
    %235 = vector.load %arg10[%c0_73, %c0_74] : memref<16x32xf32, #tpu.memory_space<vmem>>, vector<16x32xf32>
    tpu.vector_store %arg10[%c0_73, %c0_74], %234 {strides = array<i32>} : memref<16x32xf32, #tpu.memory_space<vmem>>, vector<16x32xf32>,
    %c1_i32 = arith.constant 1 : i32
    %236 = arith.cmpi eq, %arg0, %c1_i32 : i32
    %237 = arith.extui %236 : i1 to i32
    %c0_i32_75 = arith.constant 0 : i32
    %238 = arith.cmpi ne, %237, %c0_i32_75 : i32
    scf.if %238 {
      %c0_76 = arith.constant 0 : index
      %c0_77 = arith.constant 0 : index
      %239 = vector.load %arg8[%c0_76, %c0_77] : memref<1x32xf32, #tpu.memory_space<vmem>>, vector<1x32xf32>
      %240 = arith.mulf %234, %234 : vector<16x32xf32>
      %cst_78 = arith.constant dense<0.000000e+00> : vector<16xf32>
      %241 = vector.multi_reduction <add>, %240, %cst_78 [1] : vector<16x32xf32> to vector<16xf32>
      %242 = vector.shape_cast %241 : vector<16xf32> to vector<16x1xf32>
      %cst_79 = arith.constant 3.200000e+01 : f32
      %243 = vector.broadcast %cst_79 : f32 to vector<16x1xf32>
      %244 = arith.divf %242, %243 : vector<16x1xf32>
      %cst_80 = arith.constant 9.99999974E-6 : f32
      %245 = vector.broadcast %cst_80 : f32 to vector<16x1xf32>
      %246 = arith.addf %244, %245 : vector<16x1xf32>
      %247 = math.rsqrt %246 : vector<16x1xf32>
      %248 = vector.broadcast %247 : vector<16x1xf32> to vector<16x32xf32>
      %249 = arith.mulf %234, %248 : vector<16x32xf32>
      %250 = vector.broadcast %239 : vector<1x32xf32> to vector<16x32xf32>
      %251 = arith.mulf %249, %250 : vector<16x32xf32>
      %252 = arith.truncf %251 : vector<16x32xf32> to vector<16x32xbf16>
      %c0_81 = arith.constant 0 : index
      %c0_82 = arith.constant 0 : index
      %253 = vector.load %arg9[%c0_81, %c0_82] : memref<16x32xbf16, #tpu.memory_space<vmem>>, vector<16x32xbf16>
      tpu.vector_store %arg9[%c0_81, %c0_82], %252 {strides = array<i32>} : memref<16x32xbf16, #tpu.memory_space<vmem>>, vector<16x32xbf16>,
    } else {
    }
    return
  }
  func.func @transform_0(%arg0: i32) -> (i32, i32) {
    %c0_i32 = arith.constant 0 : i32
    %c0_i32_0 = arith.constant 0 : i32
    %c0_i32_1 = arith.constant 0 : i32
    return %c0_i32, %c0_i32_0 : i32, i32
  }
  func.func @transform_1(%arg0: i32) -> (i32, i32, i32) {
    %c0_i32 = arith.constant 0 : i32
    %c0_i32_0 = arith.constant 0 : i32
    %c0_i32_1 = arith.constant 0 : i32
    return %arg0, %c0_i32, %c0_i32_0 : i32, i32, i32
  }
  func.func @transform_2(%arg0: i32) -> (i32, i32, i32) {
    %c0_i32 = arith.constant 0 : i32
    %c0_i32_0 = arith.constant 0 : i32
    %c0_i32_1 = arith.constant 0 : i32
    return %arg0, %c0_i32, %c0_i32_0 : i32, i32, i32
  }
  func.func @transform_3(%arg0: i32) -> (i32, i32, i32) {
    %c0_i32 = arith.constant 0 : i32
    %c0_i32_0 = arith.constant 0 : i32
    %c0_i32_1 = arith.constant 0 : i32
    return %arg0, %c0_i32, %c0_i32_0 : i32, i32, i32
  }
  func.func @transform_4(%arg0: i32) -> (i32, i32, i32) {
    %c0_i32 = arith.constant 0 : i32
    %c0_i32_0 = arith.constant 0 : i32
    %c0_i32_1 = arith.constant 0 : i32
    return %arg0, %c0_i32, %c0_i32_0 : i32, i32, i32
  }
  func.func @transform_5(%arg0: i32) -> (i32, i32, i32) {
    %c0_i32 = arith.constant 0 : i32
    %c0_i32_0 = arith.constant 0 : i32
    %c0_i32_1 = arith.constant 0 : i32
    return %arg0, %c0_i32, %c0_i32_0 : i32, i32, i32
  }
  func.func @transform_6(%arg0: i32) -> (i32, i32, i32) {
    %c0_i32 = arith.constant 0 : i32
    %c0_i32_0 = arith.constant 0 : i32
    %c0_i32_1 = arith.constant 0 : i32
    return %arg0, %c0_i32, %c0_i32_0 : i32, i32, i32
  }
  func.func @transform_7(%arg0: i32) -> (i32, i32) {
    %c0_i32 = arith.constant 0 : i32
    %c0_i32_0 = arith.constant 0 : i32
    %c0_i32_1 = arith.constant 0 : i32
    return %c0_i32, %c0_i32_0 : i32, i32
  }
  func.func @transform_8(%arg0: i32) -> (i32, i32) {
    %c0_i32 = arith.constant 0 : i32
    %c0_i32_0 = arith.constant 0 : i32
    %c0_i32_1 = arith.constant 0 : i32
    return %c0_i32, %c0_i32_0 : i32, i32
  }
}

</mosaic_0001>

<llo_original>
// kernel: tpu_custom_call.1
$region0: #{tpu_custom_call.1}
  #allocation0 [shape = 'u32[]', space=smem, size = 0x4, offset = 0x4, fixed_abs, tag = 'smem constant byte address 0x4 - core index']
  #allocation1 [shape = 'u32[144,128]{1,0:T(1,128)}', space=vmem, size = 0x12000, scoped, tag = 'internal scratch']
  #allocation2 [shape = 'f32[16,32]{1,0:T(8,128)}', space=vmem, size = 0x2000, scoped, tag = 'scratch operand']
  #allocation3 [shape = 'f32[8,8]{1,0:T(8,128)}', space=vmem, size = 0x1000, scoped, tag = 'scratch operand']
  %s0 = inlined_call_operand.hbm [shape: f32[16,32], index: 0, kind: input, shape index: {}]
  %s1 = inlined_call_operand.vmem [shape: f32[2,1,32], index: 1, kind: input, shape index: {}]
  %s2 = inlined_call_operand.vmem [shape: f32[2,1,32], index: 2, kind: input, shape index: {}]
  %s3 = inlined_call_operand.vmem [shape: bf16[2,32,96], index: 3, kind: input, shape index: {}]
  %s4 = inlined_call_operand.vmem [shape: bf16[2,32,32], index: 4, kind: input, shape index: {}]
  %s5 = inlined_call_operand.vmem [shape: bf16[2,32,128], index: 5, kind: input, shape index: {}]
  %s6 = inlined_call_operand.vmem [shape: bf16[2,64,32], index: 6, kind: input, shape index: {}]
  %s7 = inlined_call_operand.vmem [shape: f32[1,32], index: 7, kind: input, shape index: {}]
  %s8 = inlined_call_operand.hbm [shape: bf16[16,32], index: 8, kind: output, shape index: {}]
  %s9 = sld [smem:[#allocation0]]
  $region77: #{tpu_custom_call.1} parent=0
    _
  %s11 = ssub.s32 1, %s9
  %s12 = scalar_select 0, %s11, %s9
  $region1: #{tpu_custom_call.1} parent=0
    #allocation4 [shape = 'u8[8192]{0}', space=vmem, size = 0x2000, scoped, tag = 'input window, operand 0, single buffered']
    #allocation5 [shape = 's32[2]{0}', space=sflag, size = 0x8, scoped, tag = 'scoped memory for tpu_custom_call.1']
    #allocation6 [shape = 's32[2]{0}', space=sflag, size = 0x8, scoped, tag = 'scoped memory for tpu_custom_call.1']
    #allocation7 [shape = 'u8[4096]{0}', space=vmem, size = 0x1000, scoped, tag = 'output window, operand 0, single buffered']
    %13 = vsyncpa [#allocation5], 0
    %14 = vsyncpa [#allocation6], 0
    loop: start=0, step=1, limit=4
    $region2: #{tpu_custom_call.1} parent=1 // loop_pre_header
      _
    $region3: #{tpu_custom_call.1} parent=1 // loop_header
      %s16 = sphi 0, %s20
      %p17 = scmp.ge.s32.totalorder %s16, 4
      %s24 = sphi 0, %s24
      %s26 = sphi 0, %s24
      %s27 = sphi 0, %s26
      %s41 = sphi 0, %s27
      %s47 = sphi 0, %s49
      %s50 = sphi 0, %s47
      %s51 = sphi 0, %s50
      %s67 = sphi 0, %s51
      %s73 = sphi 0, %s75
      %s76 = sphi 0, %s73
      %s77 = sphi 0, %s76
      %s93 = sphi 0, %s77
      %s99 = sphi 0, %s101
      %s102 = sphi 0, %s99
      %s103 = sphi 0, %s102
      %s119 = sphi 0, %s103
      %s125 = sphi 0, %s127
      %s128 = sphi 0, %s125
      %s129 = sphi 0, %s128
      %s145 = sphi 0, %s129
      %s151 = sphi 0, %s153
      %s154 = sphi 0, %s151
      %s155 = sphi 0, %s154
      %s171 = sphi 0, %s155
      %s177 = sphi 0, %s179
      %s180 = sphi 0, %s177
      %s181 = sphi 0, %s180
      %s197 = sphi 0, %s181
      %s201 = sphi 0, %s201
      %s203 = sphi 0, %s201
      %s204 = sphi 0, %s203
      %s218 = sphi 0, %s204
      %s222 = sphi 0, %s222
      %s224 = sphi 0, %s222
      %s225 = sphi 0, %s224
      %s239 = sphi 0, %s225
    $region4: #{tpu_custom_call.1} parent=1 // loop_header_branch
      %19 = sbr.rel (%p17) target = $region8
    $region5: #{tpu_custom_call.1} parent=1 // loop_body
      %s21 = ssub.s32 %s16, 1
      %s22 = ssub.s32 %s16, 2
      %s23 = sadd.s32 %s16, 1
      %s25 = sadd.s32 %s24, 1
      %p28 = scmp.eq.s32.totalorder %s16, 1
      %p29 = scmp.ne.s32.totalorder %s24, %s26
      %p30 = scmp.eq.s32.totalorder %s16, 0
      %p31 = por %p29, %p30
      %p32 = scmp.ne.s32.totalorder %s24, %s26
      %p33 = scmp.eq.s32.totalorder %s21, 1
      %p34 = por %p32, %p33
      %p35 = scmp.ne.s32.totalorder %s26, %s27
      %p36 = scmp.eq.s32.totalorder %s21, 0
      %p37 = por %p35, %p36
      %p38 = scmp.ne.s32.totalorder %s26, %s27
      %p39 = scmp.eq.s32.totalorder %s22, 1
      %p40 = por %p38, %p39
      %p42 = scmp.ne.s32.totalorder %s27, %s41
      %p43 = scmp.eq.s32.totalorder %s22, 0
      %p44 = por %p42, %p43
      %s45 = ssub.s32 %s16, %s23
      %p46 = scmp.eq.s32.totalorder %s45, 0
      %s48 = sadd.s32 %s47, 1
      %s49 = scalar_select %p46, %s47, %s48
      %p52 = pneg %p46
      %p53 = scmp.eq.s32.totalorder %s16, 1
      %p54 = por %p52, %p53
      %p55 = scmp.ne.s32.totalorder %s47, %s50
      %p56 = scmp.eq.s32.totalorder %s16, 0
      %p57 = por %p55, %p56
      %p58 = scmp.ne.s32.totalorder %s47, %s50
      %p59 = scmp.eq.s32.totalorder %s21, 1
      %p60 = por %p58, %p59
      %p61 = scmp.ne.s32.totalorder %s50, %s51
      %p62 = scmp.eq.s32.totalorder %s21, 0
      %p63 = por %p61, %p62
      %p64 = scmp.ne.s32.totalorder %s50, %s51
      %p65 = scmp.eq.s32.totalorder %s22, 1
      %p66 = por %p64, %p65
      %p68 = scmp.ne.s32.totalorder %s51, %s67
      %p69 = scmp.eq.s32.totalorder %s22, 0
      %p70 = por %p68, %p69
      %s71 = ssub.s32 %s16, %s23
      %p72 = scmp.eq.s32.totalorder %s71, 0
      %s74 = sadd.s32 %s73, 1
      %s75 = scalar_select %p72, %s73, %s74
      %p78 = pneg %p72
      %p79 = scmp.eq.s32.totalorder %s16, 1
      %p80 = por %p78, %p79
      %p81 = scmp.ne.s32.totalorder %s73, %s76
      %p82 = scmp.eq.s32.totalorder %s16, 0
      %p83 = por %p81, %p82
      %p84 = scmp.ne.s32.totalorder %s73, %s76
      %p85 = scmp.eq.s32.totalorder %s21, 1
      %p86 = por %p84, %p85
      %p87 = scmp.ne.s32.totalorder %s76, %s77
      %p88 = scmp.eq.s32.totalorder %s21, 0
      %p89 = por %p87, %p88
      %p90 = scmp.ne.s32.totalorder %s76, %s77
      %p91 = scmp.eq.s32.totalorder %s22, 1
      %p92 = por %p90, %p91
      %p94 = scmp.ne.s32.totalorder %s77, %s93
      %p95 = scmp.eq.s32.totalorder %s22, 0
      %p96 = por %p94, %p95
      %s97 = ssub.s32 %s16, %s23
      %p98 = scmp.eq.s32.totalorder %s97, 0
      %s100 = sadd.s32 %s99, 1
      %s101 = scalar_select %p98, %s99, %s100
      %p104 = pneg %p98
      %p105 = scmp.eq.s32.totalorder %s16, 1
      %p106 = por %p104, %p105
      %p107 = scmp.ne.s32.totalorder %s99, %s102
      %p108 = scmp.eq.s32.totalorder %s16, 0
      %p109 = por %p107, %p108
      %p110 = scmp.ne.s32.totalorder %s99, %s102
      %p111 = scmp.eq.s32.totalorder %s21, 1
      %p112 = por %p110, %p111
      %p113 = scmp.ne.s32.totalorder %s102, %s103
      %p114 = scmp.eq.s32.totalorder %s21, 0
      %p115 = por %p113, %p114
      %p116 = scmp.ne.s32.totalorder %s102, %s103
      %p117 = scmp.eq.s32.totalorder %s22, 1
      %p118 = por %p116, %p117
      %p120 = scmp.ne.s32.totalorder %s103, %s119
      %p121 = scmp.eq.s32.totalorder %s22, 0
      %p122 = por %p120, %p121
      %s123 = ssub.s32 %s16, %s23
      %p124 = scmp.eq.s32.totalorder %s123, 0
      %s126 = sadd.s32 %s125, 1
      %s127 = scalar_select %p124, %s125, %s126
      %p130 = pneg %p124
      %p131 = scmp.eq.s32.totalorder %s16, 1
      %p132 = por %p130, %p131
      %p133 = scmp.ne.s32.totalorder %s125, %s128
      %p134 = scmp.eq.s32.totalorder %s16, 0
      %p135 = por %p133, %p134
      %p136 = scmp.ne.s32.totalorder %s125, %s128
      %p137 = scmp.eq.s32.totalorder %s21, 1
      %p138 = por %p136, %p137
      %p139 = scmp.ne.s32.totalorder %s128, %s129
      %p140 = scmp.eq.s32.totalorder %s21, 0
      %p141 = por %p139, %p140
      %p142 = scmp.ne.s32.totalorder %s128, %s129
      %p143 = scmp.eq.s32.totalorder %s22, 1
      %p144 = por %p142, %p143
      %p146 = scmp.ne.s32.totalorder %s129, %s145
      %p147 = scmp.eq.s32.totalorder %s22, 0
      %p148 = por %p146, %p147
      %s149 = ssub.s32 %s16, %s23
      %p150 = scmp.eq.s32.totalorder %s149, 0
      %s152 = sadd.s32 %s151, 1
      %s153 = scalar_select %p150, %s151, %s152
      %p156 = pneg %p150
      %p157 = scmp.eq.s32.totalorder %s16, 1
      %p158 = por %p156, %p157
      %p159 = scmp.ne.s32.totalorder %s151, %s154
      %p160 = scmp.eq.s32.totalorder %s16, 0
      %p161 = por %p159, %p160
      %p162 = scmp.ne.s32.totalorder %s151, %s154
      %p163 = scmp.eq.s32.totalorder %s21, 1
      %p164 = por %p162, %p163
      %p165 = scmp.ne.s32.totalorder %s154, %s155
      %p166 = scmp.eq.s32.totalorder %s21, 0
      %p167 = por %p165, %p166
      %p168 = scmp.ne.s32.totalorder %s154, %s155
      %p169 = scmp.eq.s32.totalorder %s22, 1
      %p170 = por %p168, %p169
      %p172 = scmp.ne.s32.totalorder %s155, %s171
      %p173 = scmp.eq.s32.totalorder %s22, 0
      %p174 = por %p172, %p173
      %s175 = ssub.s32 %s16, %s23
      %p176 = scmp.eq.s32.totalorder %s175, 0
      %s178 = sadd.s32 %s177, 1
      %s179 = scalar_select %p176, %s177, %s178
      %p182 = pneg %p176
      %p183 = scmp.eq.s32.totalorder %s16, 1
      %p184 = por %p182, %p183
      %p185 = scmp.ne.s32.totalorder %s177, %s180
      %p186 = scmp.eq.s32.totalorder %s16, 0
      %p187 = por %p185, %p186
      %p188 = scmp.ne.s32.totalorder %s177, %s180
      %p189 = scmp.eq.s32.totalorder %s21, 1
      %p190 = por %p188, %p189
      %p191 = scmp.ne.s32.totalorder %s180, %s181
      %p192 = scmp.eq.s32.totalorder %s21, 0
      %p193 = por %p191, %p192
      %p194 = scmp.ne.s32.totalorder %s180, %s181
      %p195 = scmp.eq.s32.totalorder %s22, 1
      %p196 = por %p194, %p195
      %p198 = scmp.ne.s32.totalorder %s181, %s197
      %p199 = scmp.eq.s32.totalorder %s22, 0
      %p200 = por %p198, %p199
      %s202 = sadd.s32 %s201, 1
      %p205 = scmp.eq.s32.totalorder %s16, 1
      %p206 = scmp.ne.s32.totalorder %s201, %s203
      %p207 = scmp.eq.s32.totalorder %s16, 0
      %p208 = por %p206, %p207
      %p209 = scmp.ne.s32.totalorder %s201, %s203
      %p210 = scmp.eq.s32.totalorder %s21, 1
      %p211 = por %p209, %p210
      %p212 = scmp.ne.s32.totalorder %s203, %s204
      %p213 = scmp.eq.s32.totalorder %s21, 0
      %p214 = por %p212, %p213
      %p215 = scmp.ne.s32.totalorder %s203, %s204
      %p216 = scmp.eq.s32.totalorder %s22, 1
      %p217 = por %p215, %p216
      %p219 = scmp.ne.s32.totalorder %s204, %s218
      %p220 = scmp.eq.s32.totalorder %s22, 0
      %p221 = por %p219, %p220
      %s223 = sadd.s32 %s222, 1
      %p226 = scmp.eq.s32.totalorder %s16, 1
      %p227 = scmp.ne.s32.totalorder %s222, %s224
      %p228 = scmp.eq.s32.totalorder %s16, 0
      %p229 = por %p227, %p228
      %p230 = scmp.ne.s32.totalorder %s222, %s224
      %p231 = scmp.eq.s32.totalorder %s21, 1
      %p232 = por %p230, %p231
      %p233 = scmp.ne.s32.totalorder %s224, %s225
      %p234 = scmp.eq.s32.totalorder %s21, 0
      %p235 = por %p233, %p234
      %p236 = scmp.ne.s32.totalorder %s224, %s225
      %p237 = scmp.eq.s32.totalorder %s22, 1
      %p238 = por %p236, %p237
      %p240 = scmp.ne.s32.totalorder %s225, %s239
      %p241 = scmp.eq.s32.totalorder %s22, 0
      %p242 = por %p240, %p241
      %p243 = scmp.le.s32.totalorder 1, %s16
      %p244 = scmp.lt.s32.totalorder %s16, 3
      %p245 = pnand %p243, %p244
      %p246 = pneg %p245
      // Predicated region
      $region9: #{tpu_custom_call.1} parent=5 // pred_check
        _
      $region10: #{tpu_custom_call.1} parent=5 // pred_check_branch
        %248 = sbr.rel (%p245) target = $region12
      $region11: #{tpu_custom_call.1} parent=5 // pred_region
        %s249 = ssub.s32 %s16, 1
        // Predicated region
        $region13: #{tpu_custom_call.1} parent=11 // pred_check
          %p250 = pneg %p37
        $region14: #{tpu_custom_call.1} parent=11 // pred_check_branch
          %252 = sbr.rel (%p250) target = $region16
        $region15: #{tpu_custom_call.1} parent=11 // pred_region
          %s254 = ssub.s32 256, 256
          %255 = vsyncadd [#allocation5], %s254
          %s256 = sshll.u32 [#allocation4], 4
          %s257 = int_to_ptr.vmem [resolvable:$true] %s256
          %262 = dma.hbm_to_vmem [thread:$0]  %s0, 256, %s257, [#allocation5], 128, 128, 8
        $region16: #{tpu_custom_call.1} parent=11 // pred_fallthru
          _
        // Predicated region
        $region17: #{tpu_custom_call.1} parent=11 // pred_check
          %p263 = pneg %p214
        $region18: #{tpu_custom_call.1} parent=11 // pred_check_branch
          %265 = sbr.rel (%p263) target = $region20
        $region19: #{tpu_custom_call.1} parent=11 // pred_region
          _
        $region20: #{tpu_custom_call.1} parent=11 // pred_fallthru
          _
      $region12: #{tpu_custom_call.1} parent=5 // pred_fallthru
        _
      %p266 = scmp.lt.s32.totalorder %s16, 2
      // Predicated region
      $region21: #{tpu_custom_call.1} parent=5 // pred_check
        %p267 = pneg %p266
      $region22: #{tpu_custom_call.1} parent=5 // pred_check_branch
        %269 = sbr.rel (%p267) target = $region24
      $region23: #{tpu_custom_call.1} parent=5 // pred_region
        // Predicated region
        $region25: #{tpu_custom_call.1} parent=23 // pred_check
          %p270 = pneg %p57
        $region26: #{tpu_custom_call.1} parent=23 // pred_check_branch
          %272 = sbr.rel (%p270) target = $region28
        $region27: #{tpu_custom_call.1} parent=23 // pred_region
          %p273 = scmp.lt.s32.totalorder %s16, 1
          %s274 = scalar_select %p273, %s16, 1
          %s275 = scalar_lea.vmem %s1, %s274
        $region28: #{tpu_custom_call.1} parent=23 // pred_fallthru
          _
        // Predicated region
        $region29: #{tpu_custom_call.1} parent=23 // pred_check
          %p276 = pneg %p83
        $region30: #{tpu_custom_call.1} parent=23 // pred_check_branch
          %278 = sbr.rel (%p276) target = $region32
        $region31: #{tpu_custom_call.1} parent=23 // pred_region
          %p279 = scmp.lt.s32.totalorder %s16, 1
          %s280 = scalar_select %p279, %s16, 1
          %s281 = scalar_lea.vmem %s2, %s280
        $region32: #{tpu_custom_call.1} parent=23 // pred_fallthru
          _
        // Predicated region
        $region33: #{tpu_custom_call.1} parent=23 // pred_check
          %p282 = pneg %p109
        $region34: #{tpu_custom_call.1} parent=23 // pred_check_branch
          %284 = sbr.rel (%p282) target = $region36
        $region35: #{tpu_custom_call.1} parent=23 // pred_region
          %p285 = scmp.lt.s32.totalorder %s16, 1
          %s286 = scalar_select %p285, %s16, 1
          %s287 = smul.addr %s286, 4
          %s288 = smul.addr %s287, 4
          %s289 = scalar_lea.vmem %s3, %s288
        $region36: #{tpu_custom_call.1} parent=23 // pred_fallthru
          _
        // Predicated region
        $region37: #{tpu_custom_call.1} parent=23 // pred_check
          %p290 = pneg %p135
        $region38: #{tpu_custom_call.1} parent=23 // pred_check_branch
          %292 = sbr.rel (%p290) target = $region40
        $region39: #{tpu_custom_call.1} parent=23 // pred_region
          %p293 = scmp.lt.s32.totalorder %s16, 1
          %s294 = scalar_select %p293, %s16, 1
          %s295 = smul.addr %s294, 4
          %s296 = smul.addr %s295, 4
          %s297 = scalar_lea.vmem %s4, %s296
        $region40: #{tpu_custom_call.1} parent=23 // pred_fallthru
          _
        // Predicated region
        $region41: #{tpu_custom_call.1} parent=23 // pred_check
          %p298 = pneg %p161
        $region42: #{tpu_custom_call.1} parent=23 // pred_check_branch
          %300 = sbr.rel (%p298) target = $region44
        $region43: #{tpu_custom_call.1} parent=23 // pred_region
          %p301 = scmp.lt.s32.totalorder %s16, 1
          %s302 = scalar_select %p301, %s16, 1
          %s303 = smul.addr %s302, 4
          %s304 = smul.addr %s303, 4
          %s305 = scalar_lea.vmem %s5, %s304
        $region44: #{tpu_custom_call.1} parent=23 // pred_fallthru
          _
        // Predicated region
        $region45: #{tpu_custom_call.1} parent=23 // pred_check
          %p306 = pneg %p187
        $region46: #{tpu_custom_call.1} parent=23 // pred_check_branch
          %308 = sbr.rel (%p306) target = $region48
        $region47: #{tpu_custom_call.1} parent=23 // pred_region
          %p309 = scmp.lt.s32.totalorder %s16, 1
          %s310 = scalar_select %p309, %s16, 1
          %s311 = smul.addr %s310, 8
          %s312 = smul.addr %s311, 4
          %s313 = scalar_lea.vmem %s6, %s312
        $region48: #{tpu_custom_call.1} parent=23 // pred_fallthru
          _
      $region24: #{tpu_custom_call.1} parent=5 // pred_fallthru
        _
      %p314 = scmp.le.s32.totalorder 1, %s16
      %p315 = scmp.lt.s32.totalorder %s16, 3
      %p316 = pnand %p314, %p315
      %p317 = pneg %p316
      // Predicated region
      $region49: #{tpu_custom_call.1} parent=5 // pred_check
        _
      $region50: #{tpu_custom_call.1} parent=5 // pred_check_branch
        %319 = sbr.rel (%p316) target = $region52
      $region51: #{tpu_custom_call.1} parent=5 // pred_region
        %s320 = ssub.s32 %s16, 1
        // Predicated region
        $region53: #{tpu_custom_call.1} parent=51 // pred_check
          %p321 = pneg %p37
        $region54: #{tpu_custom_call.1} parent=51 // pred_check_branch
          %323 = sbr.rel (%p321) target = $region56
        $region55: #{tpu_custom_call.1} parent=51 // pred_region
          %324 = dma.done [#allocation5], 256
        $region56: #{tpu_custom_call.1} parent=51 // pred_fallthru
          _
        %p325 = pneg %p37
        %p326 = pneg %p34
        %p327 = scmp.lt.s32.totalorder %s21, 1
        %s328 = scalar_select %p327, %s21, 1
        %s329 = scalar_lea.vmem %s1, %s328
        %p330 = pneg %p63
        %p331 = pneg %p60
        %p332 = scmp.lt.s32.totalorder %s21, 1
        %s333 = scalar_select %p332, %s21, 1
        %s334 = scalar_lea.vmem %s2, %s333
        %p335 = pneg %p89
        %p336 = pneg %p86
        %p337 = scmp.lt.s32.totalorder %s21, 1
        %s338 = scalar_select %p337, %s21, 1
        %s339 = smul.addr %s338, 4
        %s340 = smul.addr %s339, 4
        %s341 = scalar_lea.vmem %s3, %s340
        %p342 = pneg %p115
        %p343 = pneg %p112
        %p344 = scmp.lt.s32.totalorder %s21, 1
        %s345 = scalar_select %p344, %s21, 1
        %s346 = smul.addr %s345, 4
        %s347 = smul.addr %s346, 4
        %s348 = scalar_lea.vmem %s4, %s347
        %p349 = pneg %p141
        %p350 = pneg %p138
        %p351 = scmp.lt.s32.totalorder %s21, 1
        %s352 = scalar_select %p351, %s21, 1
        %s353 = smul.addr %s352, 4
        %s354 = smul.addr %s353, 4
        %s355 = scalar_lea.vmem %s5, %s354
        %p356 = pneg %p167
        %p357 = pneg %p164
        %p358 = scmp.lt.s32.totalorder %s21, 1
        %s359 = scalar_select %p358, %s21, 1
        %s360 = smul.addr %s359, 8
        %s361 = smul.addr %s360, 4
        %s362 = scalar_lea.vmem %s6, %s361
        %p363 = pneg %p193
        %p364 = pneg %p190
        %p365 = pneg %p214
        %p366 = pneg %p211
        %p367 = pneg %p235
        %p368 = pneg %p232
        %p369 = scmp.lt.s32.totalorder %s21, 1
        %s370 = scalar_select %p369, %s21, 1
        %s371 = scalar_lea.vmem %s1, %s370
        %p372 = scmp.lt.s32.totalorder %s21, 1
        %s373 = scalar_select %p372, %s21, 1
        %s374 = scalar_lea.vmem %s2, %s373
        %p375 = scmp.lt.s32.totalorder %s21, 1
        %s376 = scalar_select %p375, %s21, 1
        %s377 = smul.addr %s376, 4
        %s378 = smul.addr %s377, 4
        %s379 = scalar_lea.vmem %s3, %s378
        %p380 = scmp.lt.s32.totalorder %s21, 1
        %s381 = scalar_select %p380, %s21, 1
        %s382 = smul.addr %s381, 4
        %s383 = smul.addr %s382, 4
        %s384 = scalar_lea.vmem %s4, %s383
        %p385 = scmp.lt.s32.totalorder %s21, 1
        %s386 = scalar_select %p385, %s21, 1
        %s387 = smul.addr %s386, 4
        %s388 = smul.addr %s387, 4
        %s389 = scalar_lea.vmem %s5, %s388
        %p390 = scmp.lt.s32.totalorder %s21, 1
        %s391 = scalar_select %p390, %s21, 1
        %s392 = smul.addr %s391, 8
        %s393 = smul.addr %s392, 4
        %s394 = scalar_lea.vmem %s6, %s393
        %p396 = scmp.eq.s32.totalorder %s21, 0
        // Predicated region
        $region57: #{tpu_custom_call.1} parent=51 // pred_check
          %p397 = pneg %p396
        $region58: #{tpu_custom_call.1} parent=51 // pred_check_branch
          %399 = sbr.rel (%p397) target = $region60
        $region59: #{tpu_custom_call.1} parent=51 // pred_region
          %v400 = vld [vmem:[#allocation4] sm:$0xff]
          %v401 = vld [vmem:[#allocation4 + $0x8] sm:$0xff]
          %vm402 = vcmask 261120
          %403 = vst.msk [vmem:[#allocation2] sm:$0xff] %vm402, %v400
          %404 = vst.msk [vmem:[#allocation2 + $0x8] sm:$0xff] %vm402, %v401
          %v405 = vlaneseq
          %v406 = vshrl.u32 %v405, 7
          %v407 = vlaneseq
          %v408 = vand.u32 %v407, 127
          %vm409 = vcmp.le.s32.totalorder %v408, %v406
          %v410 = vsel %vm409, 0.0, -1e+30
          %vm411 = vcmask 64512
          %412 = vst.msk [vmem:[#allocation3] sm:$0xff] %vm411, %v410
        $region60: #{tpu_custom_call.1} parent=51 // pred_fallthru
          _
        %v413 = vld [vmem:[#allocation2] sm:$0xff]
        %v414 = vld [vmem:[#allocation2 + $0x8] sm:$0xff]
        %v415 = vld [vmem:[#allocation3] sm:$0xff]
        %v416 = vld [vmem:[%s371] sm:$0x1]
        %v417 = vmul.f32 %v413, %v413
        %v418 = vmul.f32 %v414, %v414
        %vm419 = vcmask 261120
        %v420 = vsel %vm419, %v417, 0.0
        %421 = vadd.xlane.f32.xlu0 %v420
        %v422 = vpop.xlane.xlu0 %421
        %v423 = vsel %vm419, %v418, 0.0
        %424 = vadd.xlane.f32.xlu0 %v423
        %v425 = vpop.xlane.xlu0 %424
        %v426 = vrcp.pop 32.0
        %v427 = vmul.f32 %v422, %v426
        %v428 = vmul.f32 %v425, %v426
        %v429 = vadd.f32 %v427, 1e-05
        %v430 = vadd.f32 %v428, 1e-05
        %v431 = vrsqrt.pop %v429
        %v432 = vrsqrt.pop %v430
        %v433 = vmul.f32 %v413, %v431
        %v434 = vmul.f32 %v414, %v432
        %v436 = vlaneseq
        %v437 = vshrl.u32 %v436, 7
        %v438 = vsub.s32 0, %v437
        %v439 = vrot.slane %v416, %v438
        %v441 = vmul.f32 %v433, %v439
        %v442 = vmul.f32 %v434, %v439
        %v443 = vpack.c.bf16 %v442, %v441
        %v444 = vld [vmem:[%s379] sm:$0xf]
        %v445 = vld [vmem:[%s379 + $0x4] sm:$0xf]
        %v446 = vld [vmem:[%s379 + $0x8] sm:$0xf]
        %v447 = vld [vmem:[%s379 + $0xc] sm:$0xf]
        %v452 = vunpack.c.l.b16 %v444
        %v453 = vunpack.c.l.b16 %v445
        %v454 = vunpack.c.l.b16 %v446
        %v455 = vunpack.c.l.b16 %v447
        %v456 = vpack.c.b16 %v453, %v452
        %v457 = vpack.c.b16 %v455, %v454
        %v461 = vsel %vm419, %v443, 0
        %463 = vmatprep.subr.bf16.mxu0 0
        %464 = vmatpush1.bf16.msra.mxu0 %v456
        %465 = vmatprep.subr.bf16.mxu0 0
        %466 = vmatpush1.bf16.msra.mxu0 %v457
        %467 = vmatprep.subr.bf16.mxu0 0
        %468 = vmatpush1.bf16.msra.mxu0 0
        %469 = vmatprep.subr.bf16.mxu0 0
        %470 = vmatpush1.bf16.msra.mxu0 0
        %471 = vmatprep.subr.bf16.mxu0 0
        %472 = vmatpush1.bf16.msra.mxu0 0
        %473 = vmatprep.subr.bf16.mxu0 0
        %474 = vmatpush1.bf16.msra.mxu0 0
        %475 = vmatprep.subr.bf16.mxu0 0
        %476 = vmatpush1.bf16.msra.mxu0 0
        %477 = vmatprep.subr.bf16.mxu0 0
        %478 = vmatpush1.bf16.msra.mxu0 0
        %479 = vmatprep.subr.bf16.mxu0 0
        %480 = vmatpush1.bf16.msra.mxu0 0
        %481 = vmatprep.subr.bf16.mxu0 0
        %482 = vmatpush1.bf16.msra.mxu0 0
        %483 = vmatprep.subr.bf16.mxu0 0
        %484 = vmatpush1.bf16.msra.mxu0 0
        %485 = vmatprep.subr.bf16.mxu0 0
        %486 = vmatpush1.bf16.msra.mxu0 0
        %487 = vmatprep.subr.bf16.mxu0 0
        %488 = vmatpush1.bf16.msra.mxu0 0
        %489 = vmatprep.subr.bf16.mxu0 0
        %490 = vmatpush1.bf16.msra.mxu0 0
        %491 = vmatprep.subr.bf16.mxu0 0
        %492 = vmatpush1.bf16.msra.mxu0 0
        %493 = vmatprep.subr.bf16.mxu0 0
        %494 = vmatpush1.bf16.msra.mxu0 0
        %495 = vmatprep.mubr.bf16.mxu0 0
        %496 = vmatmul.mubr.bf16.gmra.mrb[0].mxu0 %v461
        %v497 = vpop.f32.mrb[0].mxu0
        %v498 = vadd.f32 0.0, %v497
        %v499 = vpop.f32.mrb[0].mxu0
        %v500 = vpop.f32.mrb[0].mxu0
        %v501 = vadd.f32 0.0, %v500
        %v502 = vpop.f32.mrb[0].mxu0
        %503 = vdwg.mxu0
        %v504 = vpack.c.bf16 %v501, %v498
        %v505 = vld [vmem:[%s384] sm:$0xf]
        %v506 = vld [vmem:[%s384 + $0x4] sm:$0xf]
        %v507 = vld [vmem:[%s384 + $0x8] sm:$0xf]
        %v508 = vld [vmem:[%s384 + $0xc] sm:$0xf]
        %510 = vrot.lane.b32.xlu0 %v504, 96
        %v511 = vpop.permute.xlu0 %510
        %vm512 = vcmask 64512
        %v514 = vsel %vm512, %v504, 0
        %v517 = vsel %vm512, %v511, 0
        %519 = vmatprep.subr.bf16.mxu0 0
        %520 = vmatpush1.bf16.xpose.msra.mxu0 %v517
        %521 = vmatprep.subr.bf16.mxu0 0
        %522 = vmatpush1.bf16.xpose.msra.mxu0 0
        %523 = vmatprep.subr.bf16.mxu0 0
        %524 = vmatpush1.bf16.xpose.msra.mxu0 0
        %525 = vmatprep.subr.bf16.mxu0 0
        %526 = vmatpush1.bf16.xpose.msra.mxu0 0
        %527 = vmatprep.subr.bf16.mxu0 0
        %528 = vmatpush1.bf16.xpose.msra.mxu0 0
        %529 = vmatprep.subr.bf16.mxu0 0
        %530 = vmatpush1.bf16.xpose.msra.mxu0 0
        %531 = vmatprep.subr.bf16.mxu0 0
        %532 = vmatpush1.bf16.xpose.msra.mxu0 0
        %533 = vmatprep.subr.bf16.mxu0 0
        %534 = vmatpush1.bf16.xpose.msra.mxu0 0
        %535 = vmatprep.subr.bf16.mxu0 0
        %536 = vmatpush1.bf16.xpose.msra.mxu0 0
        %537 = vmatprep.subr.bf16.mxu0 0
        %538 = vmatpush1.bf16.xpose.msra.mxu0 0
        %539 = vmatprep.subr.bf16.mxu0 0
        %540 = vmatpush1.bf16.xpose.msra.mxu0 0
        %541 = vmatprep.subr.bf16.mxu0 0
        %542 = vmatpush1.bf16.xpose.msra.mxu0 0
        %543 = vmatprep.subr.bf16.mxu0 0
        %544 = vmatpush1.bf16.xpose.msra.mxu0 0
        %545 = vmatprep.subr.bf16.mxu0 0
        %546 = vmatpush1.bf16.xpose.msra.mxu0 0
        %547 = vmatprep.subr.bf16.mxu0 0
        %548 = vmatpush1.bf16.xpose.msra.mxu0 0
        %549 = vmatprep.subr.bf16.mxu0 0
        %550 = vmatpush1.bf16.xpose.msra.mxu0 0
        %551 = vmatprep.mubr.bf16.mxu0 0
        %552 = vmatmul.mubr.bf16.gmra.mrb[0].mxu0 %v514
        %v553 = vpop.f32.mrb[0].mxu0
        %v554 = vadd.f32 %v415, %v553
        %v555 = vpop.f32.mrb[0].mxu0
        %v556 = vpop.f32.mrb[0].mxu0
        %v557 = vpop.f32.mrb[0].mxu0
        %558 = vdwg.mxu0
        %v559 = vsel %vm512, %v554, -inf
        %560 = vmax.xlane.f32.xlu0 %v559
        %v561 = vpop.xlane.xlu0 %560
        %v562 = vsub.f32 %v554, %v561
        %v563 = vmul.f32 %v562, 1.442695
        %v564 = vpow.pop %v563
        %v565 = vsel %vm512, %v564, 0.0
        %566 = vadd.xlane.f32.xlu0 %v565
        %v567 = vpop.xlane.xlu0 %566
        %v568 = vpack.c.bf16 %v564, %v564
        %569 = vrot.lane.b32.xlu0 %v504, 64
        %v570 = vpop.permute.xlu0 %569
        %v572 = vsel %vm512, %v568, 0
        %vm574 = vcmask 1043456
        %v576 = vsel %vm574, %v570, 0
        %578 = vmatprep.subr.bf16.mxu0 0
        %579 = vmatpush1.bf16.msra.mxu0 %v576
        %580 = vmatprep.subr.bf16.mxu0 0
        %581 = vmatpush1.bf16.msra.mxu0 0
        %582 = vmatprep.subr.bf16.mxu0 0
        %583 = vmatpush1.bf16.msra.mxu0 0
        %584 = vmatprep.subr.bf16.mxu0 0
        %585 = vmatpush1.bf16.msra.mxu0 0
        %586 = vmatprep.subr.bf16.mxu0 0
        %587 = vmatpush1.bf16.msra.mxu0 0
        %588 = vmatprep.subr.bf16.mxu0 0
        %589 = vmatpush1.bf16.msra.mxu0 0
        %590 = vmatprep.subr.bf16.mxu0 0
        %591 = vmatpush1.bf16.msra.mxu0 0
        %592 = vmatprep.subr.bf16.mxu0 0
        %593 = vmatpush1.bf16.msra.mxu0 0
        %594 = vmatprep.subr.bf16.mxu0 0
        %595 = vmatpush1.bf16.msra.mxu0 0
        %596 = vmatprep.subr.bf16.mxu0 0
        %597 = vmatpush1.bf16.msra.mxu0 0
        %598 = vmatprep.subr.bf16.mxu0 0
        %599 = vmatpush1.bf16.msra.mxu0 0
        %600 = vmatprep.subr.bf16.mxu0 0
        %601 = vmatpush1.bf16.msra.mxu0 0
        %602 = vmatprep.subr.bf16.mxu0 0
        %603 = vmatpush1.bf16.msra.mxu0 0
        %604 = vmatprep.subr.bf16.mxu0 0
        %605 = vmatpush1.bf16.msra.mxu0 0
        %606 = vmatprep.subr.bf16.mxu0 0
        %607 = vmatpush1.bf16.msra.mxu0 0
        %608 = vmatprep.subr.bf16.mxu0 0
        %609 = vmatpush1.bf16.msra.mxu0 0
        %610 = vmatprep.mubr.bf16.mxu0 0
        %611 = vmatmul.mubr.bf16.gmra.mrb[0].mxu0 %v572
        %v612 = vpop.f32.mrb[0].mxu0
        %v613 = vadd.f32 0.0, %v612
        %v614 = vpop.f32.mrb[0].mxu0
        %v615 = vpop.f32.mrb[0].mxu0
        %v616 = vpop.f32.mrb[0].mxu0
        %617 = vdwg.mxu0
        %v618 = vrcp.pop %v567
        %v619 = vmul.f32 %v613, %v618
        %v620 = vpack.c.bf16 %v619, %v619
        %621 = vrot.lane.b32.xlu0 %v504, 120
        %v622 = vpop.permute.xlu0 %621
        %623 = vrot.lane.b32.xlu0 %v504, 88
        %v624 = vpop.permute.xlu0 %623
        %v626 = vsel %vm512, %v622, 0
        %v629 = vsel %vm512, %v624, 0
        %631 = vmatprep.subr.bf16.mxu0 0
        %632 = vmatpush1.bf16.xpose.msra.mxu0 %v629
        %633 = vmatprep.subr.bf16.mxu0 0
        %634 = vmatpush1.bf16.xpose.msra.mxu0 0
        %635 = vmatprep.subr.bf16.mxu0 0
        %636 = vmatpush1.bf16.xpose.msra.mxu0 0
        %637 = vmatprep.subr.bf16.mxu0 0
        %638 = vmatpush1.bf16.xpose.msra.mxu0 0
        %639 = vmatprep.subr.bf16.mxu0 0
        %640 = vmatpush1.bf16.xpose.msra.mxu0 0
        %641 = vmatprep.subr.bf16.mxu0 0
        %642 = vmatpush1.bf16.xpose.msra.mxu0 0
        %643 = vmatprep.subr.bf16.mxu0 0
        %644 = vmatpush1.bf16.xpose.msra.mxu0 0
        %645 = vmatprep.subr.bf16.mxu0 0
        %646 = vmatpush1.bf16.xpose.msra.mxu0 0
        %647 = vmatprep.subr.bf16.mxu0 0
        %648 = vmatpush1.bf16.xpose.msra.mxu0 0
        %649 = vmatprep.subr.bf16.mxu0 0
        %650 = vmatpush1.bf16.xpose.msra.mxu0 0
        %651 = vmatprep.subr.bf16.mxu0 0
        %652 = vmatpush1.bf16.xpose.msra.mxu0 0
        %653 = vmatprep.subr.bf16.mxu0 0
        %654 = vmatpush1.bf16.xpose.msra.mxu0 0
        %655 = vmatprep.subr.bf16.mxu0 0
        %656 = vmatpush1.bf16.xpose.msra.mxu0 0
        %657 = vmatprep.subr.bf16.mxu0 0
        %658 = vmatpush1.bf16.xpose.msra.mxu0 0
        %659 = vmatprep.subr.bf16.mxu0 0
        %660 = vmatpush1.bf16.xpose.msra.mxu0 0
        %661 = vmatprep.subr.bf16.mxu0 0
        %662 = vmatpush1.bf16.xpose.msra.mxu0 0
        %663 = vmatprep.mubr.bf16.mxu0 0
        %664 = vmatmul.mubr.bf16.gmra.mrb[0].mxu0 %v626
        %v665 = vpop.f32.mrb[0].mxu0
        %v666 = vadd.f32 %v415, %v665
        %v667 = vpop.f32.mrb[0].mxu0
        %v668 = vpop.f32.mrb[0].mxu0
        %v669 = vpop.f32.mrb[0].mxu0
        %670 = vdwg.mxu0
        %v671 = vsel %vm512, %v666, -inf
        %672 = vmax.xlane.f32.xlu0 %v671
        %v673 = vpop.xlane.xlu0 %672
        %v674 = vsub.f32 %v666, %v673
        %v675 = vmul.f32 %v674, 1.442695
        %v676 = vpow.pop %v675
        %v677 = vsel %vm512, %v676, 0.0
        %678 = vadd.xlane.f32.xlu0 %v677
        %v679 = vpop.xlane.xlu0 %678
        %v680 = vpack.c.bf16 %v676, %v676
        %681 = vrot.lane.b32.xlu0 %v504, 56
        %v682 = vpop.permute.xlu0 %681
        %v684 = vsel %vm512, %v680, 0
        %v687 = vsel %vm574, %v682, 0
        %689 = vmatprep.subr.bf16.mxu0 0
        %690 = vmatpush1.bf16.msra.mxu0 %v687
        %691 = vmatprep.subr.bf16.mxu0 0
        %692 = vmatpush1.bf16.msra.mxu0 0
        %693 = vmatprep.subr.bf16.mxu0 0
        %694 = vmatpush1.bf16.msra.mxu0 0
        %695 = vmatprep.subr.bf16.mxu0 0
        %696 = vmatpush1.bf16.msra.mxu0 0
        %697 = vmatprep.subr.bf16.mxu0 0
        %698 = vmatpush1.bf16.msra.mxu0 0
        %699 = vmatprep.subr.bf16.mxu0 0
        %700 = vmatpush1.bf16.msra.mxu0 0
        %701 = vmatprep.subr.bf16.mxu0 0
        %702 = vmatpush1.bf16.msra.mxu0 0
        %703 = vmatprep.subr.bf16.mxu0 0
        %704 = vmatpush1.bf16.msra.mxu0 0
        %705 = vmatprep.subr.bf16.mxu0 0
        %706 = vmatpush1.bf16.msra.mxu0 0
        %707 = vmatprep.subr.bf16.mxu0 0
        %708 = vmatpush1.bf16.msra.mxu0 0
        %709 = vmatprep.subr.bf16.mxu0 0
        %710 = vmatpush1.bf16.msra.mxu0 0
        %711 = vmatprep.subr.bf16.mxu0 0
        %712 = vmatpush1.bf16.msra.mxu0 0
        %713 = vmatprep.subr.bf16.mxu0 0
        %714 = vmatpush1.bf16.msra.mxu0 0
        %715 = vmatprep.subr.bf16.mxu0 0
        %716 = vmatpush1.bf16.msra.mxu0 0
        %717 = vmatprep.subr.bf16.mxu0 0
        %718 = vmatpush1.bf16.msra.mxu0 0
        %719 = vmatprep.subr.bf16.mxu0 0
        %720 = vmatpush1.bf16.msra.mxu0 0
        %721 = vmatprep.mubr.bf16.mxu0 0
        %722 = vmatmul.mubr.bf16.gmra.mrb[0].mxu0 %v684
        %v723 = vpop.f32.mrb[0].mxu0
        %v724 = vadd.f32 0.0, %v723
        %v725 = vpop.f32.mrb[0].mxu0
        %v726 = vpop.f32.mrb[0].mxu0
        %v727 = vpop.f32.mrb[0].mxu0
        %728 = vdwg.mxu0
        %v729 = vrcp.pop %v679
        %v730 = vmul.f32 %v724, %v729
        %v731 = vpack.c.bf16 %v730, %v730
        %v733 = vsel %vm512, %v731, 0
        %v736 = vsel %vm574, %v506, 0
        %738 = vmatprep.subr.bf16.mxu0 0
        %739 = vmatpush1.bf16.msra.mxu0 %v736
        %740 = vmatprep.subr.bf16.mxu0 0
        %741 = vmatpush1.bf16.msra.mxu0 0
        %742 = vmatprep.subr.bf16.mxu0 0
        %743 = vmatpush1.bf16.msra.mxu0 0
        %744 = vmatprep.subr.bf16.mxu0 0
        %745 = vmatpush1.bf16.msra.mxu0 0
        %746 = vmatprep.subr.bf16.mxu0 0
        %747 = vmatpush1.bf16.msra.mxu0 0
        %748 = vmatprep.subr.bf16.mxu0 0
        %749 = vmatpush1.bf16.msra.mxu0 0
        %750 = vmatprep.subr.bf16.mxu0 0
        %751 = vmatpush1.bf16.msra.mxu0 0
        %752 = vmatprep.subr.bf16.mxu0 0
        %753 = vmatpush1.bf16.msra.mxu0 0
        %754 = vmatprep.subr.bf16.mxu0 0
        %755 = vmatpush1.bf16.msra.mxu0 0
        %756 = vmatprep.subr.bf16.mxu0 0
        %757 = vmatpush1.bf16.msra.mxu0 0
        %758 = vmatprep.subr.bf16.mxu0 0
        %759 = vmatpush1.bf16.msra.mxu0 0
        %760 = vmatprep.subr.bf16.mxu0 0
        %761 = vmatpush1.bf16.msra.mxu0 0
        %762 = vmatprep.subr.bf16.mxu0 0
        %763 = vmatpush1.bf16.msra.mxu0 0
        %764 = vmatprep.subr.bf16.mxu0 0
        %765 = vmatpush1.bf16.msra.mxu0 0
        %766 = vmatprep.subr.bf16.mxu0 0
        %767 = vmatpush1.bf16.msra.mxu0 0
        %768 = vmatprep.subr.bf16.mxu0 0
        %769 = vmatpush1.bf16.msra.mxu0 0
        %770 = vmatprep.mubr.bf16.mxu0 0
        %771 = vmatmul.mubr.bf16.gmra.mrb[0].mxu0 %v733
        %v772 = vpop.f32.mrb[0].mxu0
        %v773 = vadd.f32 0.0, %v772
        %v774 = vpop.f32.mrb[0].mxu0
        %v775 = vpop.f32.mrb[0].mxu0
        %v776 = vpop.f32.mrb[0].mxu0
        %777 = vdwg.mxu0
        %v779 = vsel %vm512, %v620, 0
        %v782 = vsel %vm574, %v505, 0
        %784 = vmatprep.subr.bf16.mxu0 0
        %785 = vmatpush1.bf16.msra.mxu0 %v782
        %786 = vmatprep.subr.bf16.mxu0 0
        %787 = vmatpush1.bf16.msra.mxu0 0
        %788 = vmatprep.subr.bf16.mxu0 0
        %789 = vmatpush1.bf16.msra.mxu0 0
        %790 = vmatprep.subr.bf16.mxu0 0
        %791 = vmatpush1.bf16.msra.mxu0 0
        %792 = vmatprep.subr.bf16.mxu0 0
        %793 = vmatpush1.bf16.msra.mxu0 0
        %794 = vmatprep.subr.bf16.mxu0 0
        %795 = vmatpush1.bf16.msra.mxu0 0
        %796 = vmatprep.subr.bf16.mxu0 0
        %797 = vmatpush1.bf16.msra.mxu0 0
        %798 = vmatprep.subr.bf16.mxu0 0
        %799 = vmatpush1.bf16.msra.mxu0 0
        %800 = vmatprep.subr.bf16.mxu0 0
        %801 = vmatpush1.bf16.msra.mxu0 0
        %802 = vmatprep.subr.bf16.mxu0 0
        %803 = vmatpush1.bf16.msra.mxu0 0
        %804 = vmatprep.subr.bf16.mxu0 0
        %805 = vmatpush1.bf16.msra.mxu0 0
        %806 = vmatprep.subr.bf16.mxu0 0
        %807 = vmatpush1.bf16.msra.mxu0 0
        %808 = vmatprep.subr.bf16.mxu0 0
        %809 = vmatpush1.bf16.msra.mxu0 0
        %810 = vmatprep.subr.bf16.mxu0 0
        %811 = vmatpush1.bf16.msra.mxu0 0
        %812 = vmatprep.subr.bf16.mxu0 0
        %813 = vmatpush1.bf16.msra.mxu0 0
        %814 = vmatprep.subr.bf16.mxu0 0
        %815 = vmatpush1.bf16.msra.mxu0 0
        %816 = vmatprep.mubr.bf16.mxu0 0
        %817 = vmatmul.mubr.bf16.gmra.mrb[0].mxu0 %v779
        %v818 = vpop.f32.mrb[0].mxu0
        %v819 = vadd.f32 %v773, %v818
        %v820 = vpop.f32.mrb[0].mxu0
        %v821 = vpop.f32.mrb[0].mxu0
        %v822 = vpop.f32.mrb[0].mxu0
        %823 = vdwg.mxu0
        %824 = vrot.lane.b32.xlu0 %v504, 112
        %v825 = vpop.permute.xlu0 %824
        %826 = vrot.lane.b32.xlu0 %v504, 80
        %v827 = vpop.permute.xlu0 %826
        %v829 = vsel %vm512, %v825, 0
        %v832 = vsel %vm512, %v827, 0
        %834 = vmatprep.subr.bf16.mxu0 0
        %835 = vmatpush1.bf16.xpose.msra.mxu0 %v832
        %836 = vmatprep.subr.bf16.mxu0 0
        %837 = vmatpush1.bf16.xpose.msra.mxu0 0
        %838 = vmatprep.subr.bf16.mxu0 0
        %839 = vmatpush1.bf16.xpose.msra.mxu0 0
        %840 = vmatprep.subr.bf16.mxu0 0
        %841 = vmatpush1.bf16.xpose.msra.mxu0 0
        %842 = vmatprep.subr.bf16.mxu0 0
        %843 = vmatpush1.bf16.xpose.msra.mxu0 0
        %844 = vmatprep.subr.bf16.mxu0 0
        %845 = vmatpush1.bf16.xpose.msra.mxu0 0
        %846 = vmatprep.subr.bf16.mxu0 0
        %847 = vmatpush1.bf16.xpose.msra.mxu0 0
        %848 = vmatprep.subr.bf16.mxu0 0
        %849 = vmatpush1.bf16.xpose.msra.mxu0 0
        %850 = vmatprep.subr.bf16.mxu0 0
        %851 = vmatpush1.bf16.xpose.msra.mxu0 0
        %852 = vmatprep.subr.bf16.mxu0 0
        %853 = vmatpush1.bf16.xpose.msra.mxu0 0
        %854 = vmatprep.subr.bf16.mxu0 0
        %855 = vmatpush1.bf16.xpose.msra.mxu0 0
        %856 = vmatprep.subr.bf16.mxu0 0
        %857 = vmatpush1.bf16.xpose.msra.mxu0 0
        %858 = vmatprep.subr.bf16.mxu0 0
        %859 = vmatpush1.bf16.xpose.msra.mxu0 0
        %860 = vmatprep.subr.bf16.mxu0 0
        %861 = vmatpush1.bf16.xpose.msra.mxu0 0
        %862 = vmatprep.subr.bf16.mxu0 0
        %863 = vmatpush1.bf16.xpose.msra.mxu0 0
        %864 = vmatprep.subr.bf16.mxu0 0
        %865 = vmatpush1.bf16.xpose.msra.mxu0 0
        %866 = vmatprep.mubr.bf16.mxu0 0
        %867 = vmatmul.mubr.bf16.gmra.mrb[0].mxu0 %v829
        %v868 = vpop.f32.mrb[0].mxu0
        %v869 = vadd.f32 %v415, %v868
        %v870 = vpop.f32.mrb[0].mxu0
        %v871 = vpop.f32.mrb[0].mxu0
        %v872 = vpop.f32.mrb[0].mxu0
        %873 = vdwg.mxu0
        %v874 = vsel %vm512, %v869, -inf
        %875 = vmax.xlane.f32.xlu0 %v874
        %v876 = vpop.xlane.xlu0 %875
        %v877 = vsub.f32 %v869, %v876
        %v878 = vmul.f32 %v877, 1.442695
        %v879 = vpow.pop %v878
        %v880 = vsel %vm512, %v879, 0.0
        %881 = vadd.xlane.f32.xlu0 %v880
        %v882 = vpop.xlane.xlu0 %881
        %v883 = vpack.c.bf16 %v879, %v879
        %884 = vrot.lane.b32.xlu0 %v504, 48
        %v885 = vpop.permute.xlu0 %884
        %v887 = vsel %vm512, %v883, 0
        %v890 = vsel %vm574, %v885, 0
        %892 = vmatprep.subr.bf16.mxu0 0
        %893 = vmatpush1.bf16.msra.mxu0 %v890
        %894 = vmatprep.subr.bf16.mxu0 0
        %895 = vmatpush1.bf16.msra.mxu0 0
        %896 = vmatprep.subr.bf16.mxu0 0
        %897 = vmatpush1.bf16.msra.mxu0 0
        %898 = vmatprep.subr.bf16.mxu0 0
        %899 = vmatpush1.bf16.msra.mxu0 0
        %900 = vmatprep.subr.bf16.mxu0 0
        %901 = vmatpush1.bf16.msra.mxu0 0
        %902 = vmatprep.subr.bf16.mxu0 0
        %903 = vmatpush1.bf16.msra.mxu0 0
        %904 = vmatprep.subr.bf16.mxu0 0
        %905 = vmatpush1.bf16.msra.mxu0 0
        %906 = vmatprep.subr.bf16.mxu0 0
        %907 = vmatpush1.bf16.msra.mxu0 0
        %908 = vmatprep.subr.bf16.mxu0 0
        %909 = vmatpush1.bf16.msra.mxu0 0
        %910 = vmatprep.subr.bf16.mxu0 0
        %911 = vmatpush1.bf16.msra.mxu0 0
        %912 = vmatprep.subr.bf16.mxu0 0
        %913 = vmatpush1.bf16.msra.mxu0 0
        %914 = vmatprep.subr.bf16.mxu0 0
        %915 = vmatpush1.bf16.msra.mxu0 0
        %916 = vmatprep.subr.bf16.mxu0 0
        %917 = vmatpush1.bf16.msra.mxu0 0
        %918 = vmatprep.subr.bf16.mxu0 0
        %919 = vmatpush1.bf16.msra.mxu0 0
        %920 = vmatprep.subr.bf16.mxu0 0
        %921 = vmatpush1.bf16.msra.mxu0 0
        %922 = vmatprep.subr.bf16.mxu0 0
        %923 = vmatpush1.bf16.msra.mxu0 0
        %924 = vmatprep.mubr.bf16.mxu0 0
        %925 = vmatmul.mubr.bf16.gmra.mrb[0].mxu0 %v887
        %v926 = vpop.f32.mrb[0].mxu0
        %v927 = vadd.f32 0.0, %v926
        %v928 = vpop.f32.mrb[0].mxu0
        %v929 = vpop.f32.mrb[0].mxu0
        %v930 = vpop.f32.mrb[0].mxu0
        %931 = vdwg.mxu0
        %v932 = vrcp.pop %v882
        %v933 = vmul.f32 %v927, %v932
        %v934 = vpack.c.bf16 %v933, %v933
        %v936 = vsel %vm512, %v934, 0
        %v939 = vsel %vm574, %v507, 0
        %941 = vmatprep.subr.bf16.mxu0 0
        %942 = vmatpush1.bf16.msra.mxu0 %v939
        %943 = vmatprep.subr.bf16.mxu0 0
        %944 = vmatpush1.bf16.msra.mxu0 0
        %945 = vmatprep.subr.bf16.mxu0 0
        %946 = vmatpush1.bf16.msra.mxu0 0
        %947 = vmatprep.subr.bf16.mxu0 0
        %948 = vmatpush1.bf16.msra.mxu0 0
        %949 = vmatprep.subr.bf16.mxu0 0
        %950 = vmatpush1.bf16.msra.mxu0 0
        %951 = vmatprep.subr.bf16.mxu0 0
        %952 = vmatpush1.bf16.msra.mxu0 0
        %953 = vmatprep.subr.bf16.mxu0 0
        %954 = vmatpush1.bf16.msra.mxu0 0
        %955 = vmatprep.subr.bf16.mxu0 0
        %956 = vmatpush1.bf16.msra.mxu0 0
        %957 = vmatprep.subr.bf16.mxu0 0
        %958 = vmatpush1.bf16.msra.mxu0 0
        %959 = vmatprep.subr.bf16.mxu0 0
        %960 = vmatpush1.bf16.msra.mxu0 0
        %961 = vmatprep.subr.bf16.mxu0 0
        %962 = vmatpush1.bf16.msra.mxu0 0
        %963 = vmatprep.subr.bf16.mxu0 0
        %964 = vmatpush1.bf16.msra.mxu0 0
        %965 = vmatprep.subr.bf16.mxu0 0
        %966 = vmatpush1.bf16.msra.mxu0 0
        %967 = vmatprep.subr.bf16.mxu0 0
        %968 = vmatpush1.bf16.msra.mxu0 0
        %969 = vmatprep.subr.bf16.mxu0 0
        %970 = vmatpush1.bf16.msra.mxu0 0
        %971 = vmatprep.subr.bf16.mxu0 0
        %972 = vmatpush1.bf16.msra.mxu0 0
        %973 = vmatprep.mubr.bf16.mxu0 0
        %974 = vmatmul.mubr.bf16.gmra.mrb[0].mxu0 %v936
        %v975 = vpop.f32.mrb[0].mxu0
        %v976 = vadd.f32 0.0, %v975
        %v977 = vpop.f32.mrb[0].mxu0
        %v978 = vpop.f32.mrb[0].mxu0
        %v979 = vpop.f32.mrb[0].mxu0
        %980 = vdwg.mxu0
        %v981 = vadd.f32 %v819, %v976
        %982 = vrot.lane.b32.xlu0 %v504, 104
        %v983 = vpop.permute.xlu0 %982
        %984 = vrot.lane.b32.xlu0 %v504, 72
        %v985 = vpop.permute.xlu0 %984
        %v987 = vsel %vm512, %v983, 0
        %v990 = vsel %vm512, %v985, 0
        %992 = vmatprep.subr.bf16.mxu0 0
        %993 = vmatpush1.bf16.xpose.msra.mxu0 %v990
        %994 = vmatprep.subr.bf16.mxu0 0
        %995 = vmatpush1.bf16.xpose.msra.mxu0 0
        %996 = vmatprep.subr.bf16.mxu0 0
        %997 = vmatpush1.bf16.xpose.msra.mxu0 0
        %998 = vmatprep.subr.bf16.mxu0 0
        %999 = vmatpush1.bf16.xpose.msra.mxu0 0
        %1000 = vmatprep.subr.bf16.mxu0 0
        %1001 = vmatpush1.bf16.xpose.msra.mxu0 0
        %1002 = vmatprep.subr.bf16.mxu0 0
        %1003 = vmatpush1.bf16.xpose.msra.mxu0 0
        %1004 = vmatprep.subr.bf16.mxu0 0
        %1005 = vmatpush1.bf16.xpose.msra.mxu0 0
        %1006 = vmatprep.subr.bf16.mxu0 0
        %1007 = vmatpush1.bf16.xpose.msra.mxu0 0
        %1008 = vmatprep.subr.bf16.mxu0 0
        %1009 = vmatpush1.bf16.xpose.msra.mxu0 0
        %1010 = vmatprep.subr.bf16.mxu0 0
        %1011 = vmatpush1.bf16.xpose.msra.mxu0 0
        %1012 = vmatprep.subr.bf16.mxu0 0
        %1013 = vmatpush1.bf16.xpose.msra.mxu0 0
        %1014 = vmatprep.subr.bf16.mxu0 0
        %1015 = vmatpush1.bf16.xpose.msra.mxu0 0
        %1016 = vmatprep.subr.bf16.mxu0 0
        %1017 = vmatpush1.bf16.xpose.msra.mxu0 0
        %1018 = vmatprep.subr.bf16.mxu0 0
        %1019 = vmatpush1.bf16.xpose.msra.mxu0 0
        %1020 = vmatprep.subr.bf16.mxu0 0
        %1021 = vmatpush1.bf16.xpose.msra.mxu0 0
        %1022 = vmatprep.subr.bf16.mxu0 0
        %1023 = vmatpush1.bf16.xpose.msra.mxu0 0
        %1024 = vmatprep.mubr.bf16.mxu0 0
        %1025 = vmatmul.mubr.bf16.gmra.mrb[0].mxu0 %v987
        %v1026 = vpop.f32.mrb[0].mxu0
        %v1027 = vadd.f32 %v415, %v1026
        %v1028 = vpop.f32.mrb[0].mxu0
        %v1029 = vpop.f32.mrb[0].mxu0
        %v1030 = vpop.f32.mrb[0].mxu0
        %1031 = vdwg.mxu0
        %v1032 = vsel %vm512, %v1027, -inf
        %1033 = vmax.xlane.f32.xlu0 %v1032
        %v1034 = vpop.xlane.xlu0 %1033
        %v1035 = vsub.f32 %v1027, %v1034
        %v1036 = vmul.f32 %v1035, 1.442695
        %v1037 = vpow.pop %v1036
        %v1038 = vsel %vm512, %v1037, 0.0
        %1039 = vadd.xlane.f32.xlu0 %v1038
        %v1040 = vpop.xlane.xlu0 %1039
        %v1041 = vpack.c.bf16 %v1037, %v1037
        %1042 = vrot.lane.b32.xlu0 %v504, 40
        %v1043 = vpop.permute.xlu0 %1042
        %v1045 = vsel %vm512, %v1041, 0
        %v1048 = vsel %vm574, %v1043, 0
        %1050 = vmatprep.subr.bf16.mxu0 0
        %1051 = vmatpush1.bf16.msra.mxu0 %v1048
        %1052 = vmatprep.subr.bf16.mxu0 0
        %1053 = vmatpush1.bf16.msra.mxu0 0
        %1054 = vmatprep.subr.bf16.mxu0 0
        %1055 = vmatpush1.bf16.msra.mxu0 0
        %1056 = vmatprep.subr.bf16.mxu0 0
        %1057 = vmatpush1.bf16.msra.mxu0 0
        %1058 = vmatprep.subr.bf16.mxu0 0
        %1059 = vmatpush1.bf16.msra.mxu0 0
        %1060 = vmatprep.subr.bf16.mxu0 0
        %1061 = vmatpush1.bf16.msra.mxu0 0
        %1062 = vmatprep.subr.bf16.mxu0 0
        %1063 = vmatpush1.bf16.msra.mxu0 0
        %1064 = vmatprep.subr.bf16.mxu0 0
        %1065 = vmatpush1.bf16.msra.mxu0 0
        %1066 = vmatprep.subr.bf16.mxu0 0
        %1067 = vmatpush1.bf16.msra.mxu0 0
        %1068 = vmatprep.subr.bf16.mxu0 0
        %1069 = vmatpush1.bf16.msra.mxu0 0
        %1070 = vmatprep.subr.bf16.mxu0 0
        %1071 = vmatpush1.bf16.msra.mxu0 0
        %1072 = vmatprep.subr.bf16.mxu0 0
        %1073 = vmatpush1.bf16.msra.mxu0 0
        %1074 = vmatprep.subr.bf16.mxu0 0
        %1075 = vmatpush1.bf16.msra.mxu0 0
        %1076 = vmatprep.subr.bf16.mxu0 0
        %1077 = vmatpush1.bf16.msra.mxu0 0
        %1078 = vmatprep.subr.bf16.mxu0 0
        %1079 = vmatpush1.bf16.msra.mxu0 0
        %1080 = vmatprep.subr.bf16.mxu0 0
        %1081 = vmatpush1.bf16.msra.mxu0 0
        %1082 = vmatprep.mubr.bf16.mxu0 0
        %1083 = vmatmul.mubr.bf16.gmra.mrb[0].mxu0 %v1045
        %v1084 = vpop.f32.mrb[0].mxu0
        %v1085 = vadd.f32 0.0, %v1084
        %v1086 = vpop.f32.mrb[0].mxu0
        %v1087 = vpop.f32.mrb[0].mxu0
        %v1088 = vpop.f32.mrb[0].mxu0
        %1089 = vdwg.mxu0
        %v1090 = vrcp.pop %v1040
        %v1091 = vmul.f32 %v1085, %v1090
        %v1092 = vpack.c.bf16 %v1091, %v1091
        %v1094 = vsel %vm512, %v1092, 0
        %v1097 = vsel %vm574, %v508, 0
        %1099 = vmatprep.subr.bf16.mxu0 0
        %1100 = vmatpush1.bf16.msra.mxu0 %v1097
        %1101 = vmatprep.subr.bf16.mxu0 0
        %1102 = vmatpush1.bf16.msra.mxu0 0
        %1103 = vmatprep.subr.bf16.mxu0 0
        %1104 = vmatpush1.bf16.msra.mxu0 0
        %1105 = vmatprep.subr.bf16.mxu0 0
        %1106 = vmatpush1.bf16.msra.mxu0 0
        %1107 = vmatprep.subr.bf16.mxu0 0
        %1108 = vmatpush1.bf16.msra.mxu0 0
        %1109 = vmatprep.subr.bf16.mxu0 0
        %1110 = vmatpush1.bf16.msra.mxu0 0
        %1111 = vmatprep.subr.bf16.mxu0 0
        %1112 = vmatpush1.bf16.msra.mxu0 0
        %1113 = vmatprep.subr.bf16.mxu0 0
        %1114 = vmatpush1.bf16.msra.mxu0 0
        %1115 = vmatprep.subr.bf16.mxu0 0
        %1116 = vmatpush1.bf16.msra.mxu0 0
        %1117 = vmatprep.subr.bf16.mxu0 0
        %1118 = vmatpush1.bf16.msra.mxu0 0
        %1119 = vmatprep.subr.bf16.mxu0 0
        %1120 = vmatpush1.bf16.msra.mxu0 0
        %1121 = vmatprep.subr.bf16.mxu0 0
        %1122 = vmatpush1.bf16.msra.mxu0 0
        %1123 = vmatprep.subr.bf16.mxu0 0
        %1124 = vmatpush1.bf16.msra.mxu0 0
        %1125 = vmatprep.subr.bf16.mxu0 0
        %1126 = vmatpush1.bf16.msra.mxu0 0
        %1127 = vmatprep.subr.bf16.mxu0 0
        %1128 = vmatpush1.bf16.msra.mxu0 0
        %1129 = vmatprep.subr.bf16.mxu0 0
        %1130 = vmatpush1.bf16.msra.mxu0 0
        %1131 = vmatprep.mubr.bf16.mxu0 0
        %1132 = vmatmul.mubr.bf16.gmra.mrb[0].mxu0 %v1094
        %v1133 = vpop.f32.mrb[0].mxu0
        %v1134 = vadd.f32 0.0, %v1133
        %v1135 = vpop.f32.mrb[0].mxu0
        %v1136 = vpop.f32.mrb[0].mxu0
        %v1137 = vpop.f32.mrb[0].mxu0
        %1138 = vdwg.mxu0
        %v1139 = vadd.f32 %v981, %v1134
        %v1140 = vrot.slane %v504, 4
        %1141 = vrot.lane.b32.xlu0 %v1140, 96
        %v1142 = vpop.permute.xlu0 %1141
        %v1144 = vsel %vm512, %v1140, 0
        %v1147 = vsel %vm512, %v1142, 0
        %1149 = vmatprep.subr.bf16.mxu0 0
        %1150 = vmatpush1.bf16.xpose.msra.mxu0 %v1147
        %1151 = vmatprep.subr.bf16.mxu0 0
        %1152 = vmatpush1.bf16.xpose.msra.mxu0 0
        %1153 = vmatprep.subr.bf16.mxu0 0
        %1154 = vmatpush1.bf16.xpose.msra.mxu0 0
        %1155 = vmatprep.subr.bf16.mxu0 0
        %1156 = vmatpush1.bf16.xpose.msra.mxu0 0
        %1157 = vmatprep.subr.bf16.mxu0 0
        %1158 = vmatpush1.bf16.xpose.msra.mxu0 0
        %1159 = vmatprep.subr.bf16.mxu0 0
        %1160 = vmatpush1.bf16.xpose.msra.mxu0 0
        %1161 = vmatprep.subr.bf16.mxu0 0
        %1162 = vmatpush1.bf16.xpose.msra.mxu0 0
        %1163 = vmatprep.subr.bf16.mxu0 0
        %1164 = vmatpush1.bf16.xpose.msra.mxu0 0
        %1165 = vmatprep.subr.bf16.mxu0 0
        %1166 = vmatpush1.bf16.xpose.msra.mxu0 0
        %1167 = vmatprep.subr.bf16.mxu0 0
        %1168 = vmatpush1.bf16.xpose.msra.mxu0 0
        %1169 = vmatprep.subr.bf16.mxu0 0
        %1170 = vmatpush1.bf16.xpose.msra.mxu0 0
        %1171 = vmatprep.subr.bf16.mxu0 0
        %1172 = vmatpush1.bf16.xpose.msra.mxu0 0
        %1173 = vmatprep.subr.bf16.mxu0 0
        %1174 = vmatpush1.bf16.xpose.msra.mxu0 0
        %1175 = vmatprep.subr.bf16.mxu0 0
        %1176 = vmatpush1.bf16.xpose.msra.mxu0 0
        %1177 = vmatprep.subr.bf16.mxu0 0
        %1178 = vmatpush1.bf16.xpose.msra.mxu0 0
        %1179 = vmatprep.subr.bf16.mxu0 0
        %1180 = vmatpush1.bf16.xpose.msra.mxu0 0
        %1181 = vmatprep.mubr.bf16.mxu0 0
        %1182 = vmatmul.mubr.bf16.gmra.mrb[0].mxu0 %v1144
        %v1183 = vpop.f32.mrb[0].mxu0
        %v1184 = vadd.f32 %v415, %v1183
        %v1185 = vpop.f32.mrb[0].mxu0
        %v1186 = vpop.f32.mrb[0].mxu0
        %v1187 = vpop.f32.mrb[0].mxu0
        %1188 = vdwg.mxu0
        %v1189 = vsel %vm512, %v1184, -inf
        %1190 = vmax.xlane.f32.xlu0 %v1189
        %v1191 = vpop.xlane.xlu0 %1190
        %v1192 = vsub.f32 %v1184, %v1191
        %v1193 = vmul.f32 %v1192, 1.442695
        %v1194 = vpow.pop %v1193
        %v1195 = vsel %vm512, %v1194, 0.0
        %1196 = vadd.xlane.f32.xlu0 %v1195
        %v1197 = vpop.xlane.xlu0 %1196
        %v1198 = vpack.c.bf16 %v1194, %v1194
        %1199 = vrot.lane.b32.xlu0 %v1140, 64
        %v1200 = vpop.permute.xlu0 %1199
        %v1202 = vsel %vm512, %v1198, 0
        %v1205 = vsel %vm574, %v1200, 0
        %1207 = vmatprep.subr.bf16.mxu0 0
        %1208 = vmatpush1.bf16.msra.mxu0 %v1205
        %1209 = vmatprep.subr.bf16.mxu0 0
        %1210 = vmatpush1.bf16.msra.mxu0 0
        %1211 = vmatprep.subr.bf16.mxu0 0
        %1212 = vmatpush1.bf16.msra.mxu0 0
        %1213 = vmatprep.subr.bf16.mxu0 0
        %1214 = vmatpush1.bf16.msra.mxu0 0
        %1215 = vmatprep.subr.bf16.mxu0 0
        %1216 = vmatpush1.bf16.msra.mxu0 0
        %1217 = vmatprep.subr.bf16.mxu0 0
        %1218 = vmatpush1.bf16.msra.mxu0 0
        %1219 = vmatprep.subr.bf16.mxu0 0
        %1220 = vmatpush1.bf16.msra.mxu0 0
        %1221 = vmatprep.subr.bf16.mxu0 0
        %1222 = vmatpush1.bf16.msra.mxu0 0
        %1223 = vmatprep.subr.bf16.mxu0 0
        %1224 = vmatpush1.bf16.msra.mxu0 0
        %1225 = vmatprep.subr.bf16.mxu0 0
        %1226 = vmatpush1.bf16.msra.mxu0 0
        %1227 = vmatprep.subr.bf16.mxu0 0
        %1228 = vmatpush1.bf16.msra.mxu0 0
        %1229 = vmatprep.subr.bf16.mxu0 0
        %1230 = vmatpush1.bf16.msra.mxu0 0
        %1231 = vmatprep.subr.bf16.mxu0 0
        %1232 = vmatpush1.bf16.msra.mxu0 0
        %1233 = vmatprep.subr.bf16.mxu0 0
        %1234 = vmatpush1.bf16.msra.mxu0 0
        %1235 = vmatprep.subr.bf16.mxu0 0
        %1236 = vmatpush1.bf16.msra.mxu0 0
        %1237 = vmatprep.subr.bf16.mxu0 0
        %1238 = vmatpush1.bf16.msra.mxu0 0
        %1239 = vmatprep.mubr.bf16.mxu0 0
        %1240 = vmatmul.mubr.bf16.gmra.mrb[0].mxu0 %v1202
        %v1241 = vpop.f32.mrb[0].mxu0
        %v1242 = vadd.f32 0.0, %v1241
        %v1243 = vpop.f32.mrb[0].mxu0
        %v1244 = vpop.f32.mrb[0].mxu0
        %v1245 = vpop.f32.mrb[0].mxu0
        %1246 = vdwg.mxu0
        %v1247 = vrcp.pop %v1197
        %v1248 = vmul.f32 %v1242, %v1247
        %v1249 = vpack.c.bf16 %v1248, %v1248
        %1250 = vrot.lane.b32.xlu0 %v1140, 120
        %v1251 = vpop.permute.xlu0 %1250
        %1252 = vrot.lane.b32.xlu0 %v1140, 88
        %v1253 = vpop.permute.xlu0 %1252
        %v1255 = vsel %vm512, %v1251, 0
        %v1258 = vsel %vm512, %v1253, 0
        %1260 = vmatprep.subr.bf16.mxu0 0
        %1261 = vmatpush1.bf16.xpose.msra.mxu0 %v1258
        %1262 = vmatprep.subr.bf16.mxu0 0
        %1263 = vmatpush1.bf16.xpose.msra.mxu0 0
        %1264 = vmatprep.subr.bf16.mxu0 0
        %1265 = vmatpush1.bf16.xpose.msra.mxu0 0
        %1266 = vmatprep.subr.bf16.mxu0 0
        %1267 = vmatpush1.bf16.xpose.msra.mxu0 0
        %1268 = vmatprep.subr.bf16.mxu0 0
        %1269 = vmatpush1.bf16.xpose.msra.mxu0 0
        %1270 = vmatprep.subr.bf16.mxu0 0
        %1271 = vmatpush1.bf16.xpose.msra.mxu0 0
        %1272 = vmatprep.subr.bf16.mxu0 0
        %1273 = vmatpush1.bf16.xpose.msra.mxu0 0
        %1274 = vmatprep.subr.bf16.mxu0 0
        %1275 = vmatpush1.bf16.xpose.msra.mxu0 0
        %1276 = vmatprep.subr.bf16.mxu0 0
        %1277 = vmatpush1.bf16.xpose.msra.mxu0 0
        %1278 = vmatprep.subr.bf16.mxu0 0
        %1279 = vmatpush1.bf16.xpose.msra.mxu0 0
        %1280 = vmatprep.subr.bf16.mxu0 0
        %1281 = vmatpush1.bf16.xpose.msra.mxu0 0
        %1282 = vmatprep.subr.bf16.mxu0 0
        %1283 = vmatpush1.bf16.xpose.msra.mxu0 0
        %1284 = vmatprep.subr.bf16.mxu0 0
        %1285 = vmatpush1.bf16.xpose.msra.mxu0 0
        %1286 = vmatprep.subr.bf16.mxu0 0
        %1287 = vmatpush1.bf16.xpose.msra.mxu0 0
        %1288 = vmatprep.subr.bf16.mxu0 0
        %1289 = vmatpush1.bf16.xpose.msra.mxu0 0
        %1290 = vmatprep.subr.bf16.mxu0 0
        %1291 = vmatpush1.bf16.xpose.msra.mxu0 0
        %1292 = vmatprep.mubr.bf16.mxu0 0
        %1293 = vmatmul.mubr.bf16.gmra.mrb[0].mxu0 %v1255
        %v1294 = vpop.f32.mrb[0].mxu0
        %v1295 = vadd.f32 %v415, %v1294
        %v1296 = vpop.f32.mrb[0].mxu0
        %v1297 = vpop.f32.mrb[0].mxu0
        %v1298 = vpop.f32.mrb[0].mxu0
        %1299 = vdwg.mxu0
        %v1300 = vsel %vm512, %v1295, -inf
        %1301 = vmax.xlane.f32.xlu0 %v1300
        %v1302 = vpop.xlane.xlu0 %1301
        %v1303 = vsub.f32 %v1295, %v1302
        %v1304 = vmul.f32 %v1303, 1.442695
        %v1305 = vpow.pop %v1304
        %v1306 = vsel %vm512, %v1305, 0.0
        %1307 = vadd.xlane.f32.xlu0 %v1306
        %v1308 = vpop.xlane.xlu0 %1307
        %v1309 = vpack.c.bf16 %v1305, %v1305
        %1310 = vrot.lane.b32.xlu0 %v1140, 56
        %v1311 = vpop.permute.xlu0 %1310
        %v1313 = vsel %vm512, %v1309, 0
        %v1316 = vsel %vm574, %v1311, 0
        %1318 = vmatprep.subr.bf16.mxu0 0
        %1319 = vmatpush1.bf16.msra.mxu0 %v1316
        %1320 = vmatprep.subr.bf16.mxu0 0
        %1321 = vmatpush1.bf16.msra.mxu0 0
        %1322 = vmatprep.subr.bf16.mxu0 0
        %1323 = vmatpush1.bf16.msra.mxu0 0
        %1324 = vmatprep.subr.bf16.mxu0 0
        %1325 = vmatpush1.bf16.msra.mxu0 0
        %1326 = vmatprep.subr.bf16.mxu0 0
        %1327 = vmatpush1.bf16.msra.mxu0 0
        %1328 = vmatprep.subr.bf16.mxu0 0
        %1329 = vmatpush1.bf16.msra.mxu0 0
        %1330 = vmatprep.subr.bf16.mxu0 0
        %1331 = vmatpush1.bf16.msra.mxu0 0
        %1332 = vmatprep.subr.bf16.mxu0 0
        %1333 = vmatpush1.bf16.msra.mxu0 0
        %1334 = vmatprep.subr.bf16.mxu0 0
        %1335 = vmatpush1.bf16.msra.mxu0 0
        %1336 = vmatprep.subr.bf16.mxu0 0
        %1337 = vmatpush1.bf16.msra.mxu0 0
        %1338 = vmatprep.subr.bf16.mxu0 0
        %1339 = vmatpush1.bf16.msra.mxu0 0
        %1340 = vmatprep.subr.bf16.mxu0 0
        %1341 = vmatpush1.bf16.msra.mxu0 0
        %1342 = vmatprep.subr.bf16.mxu0 0
        %1343 = vmatpush1.bf16.msra.mxu0 0
        %1344 = vmatprep.subr.bf16.mxu0 0
        %1345 = vmatpush1.bf16.msra.mxu0 0
        %1346 = vmatprep.subr.bf16.mxu0 0
        %1347 = vmatpush1.bf16.msra.mxu0 0
        %1348 = vmatprep.subr.bf16.mxu0 0
        %1349 = vmatpush1.bf16.msra.mxu0 0
        %1350 = vmatprep.mubr.bf16.mxu0 0
        %1351 = vmatmul.mubr.bf16.gmra.mrb[0].mxu0 %v1313
        %v1352 = vpop.f32.mrb[0].mxu0
        %v1353 = vadd.f32 0.0, %v1352
        %v1354 = vpop.f32.mrb[0].mxu0
        %v1355 = vpop.f32.mrb[0].mxu0
        %v1356 = vpop.f32.mrb[0].mxu0
        %1357 = vdwg.mxu0
        %v1358 = vrcp.pop %v1308
        %v1359 = vmul.f32 %v1353, %v1358
        %v1360 = vpack.c.bf16 %v1359, %v1359
        %v1362 = vsel %vm512, %v1360, 0
        %1364 = vmatprep.subr.bf16.mxu0 0
        %1365 = vmatpush1.bf16.msra.mxu0 %v736
        %1366 = vmatprep.subr.bf16.mxu0 0
        %1367 = vmatpush1.bf16.msra.mxu0 0
        %1368 = vmatprep.subr.bf16.mxu0 0
        %1369 = vmatpush1.bf16.msra.mxu0 0
        %1370 = vmatprep.subr.bf16.mxu0 0
        %1371 = vmatpush1.bf16.msra.mxu0 0
        %1372 = vmatprep.subr.bf16.mxu0 0
        %1373 = vmatpush1.bf16.msra.mxu0 0
        %1374 = vmatprep.subr.bf16.mxu0 0
        %1375 = vmatpush1.bf16.msra.mxu0 0
        %1376 = vmatprep.subr.bf16.mxu0 0
        %1377 = vmatpush1.bf16.msra.mxu0 0
        %1378 = vmatprep.subr.bf16.mxu0 0
        %1379 = vmatpush1.bf16.msra.mxu0 0
        %1380 = vmatprep.subr.bf16.mxu0 0
        %1381 = vmatpush1.bf16.msra.mxu0 0
        %1382 = vmatprep.subr.bf16.mxu0 0
        %1383 = vmatpush1.bf16.msra.mxu0 0
        %1384 = vmatprep.subr.bf16.mxu0 0
        %1385 = vmatpush1.bf16.msra.mxu0 0
        %1386 = vmatprep.subr.bf16.mxu0 0
        %1387 = vmatpush1.bf16.msra.mxu0 0
        %1388 = vmatprep.subr.bf16.mxu0 0
        %1389 = vmatpush1.bf16.msra.mxu0 0
        %1390 = vmatprep.subr.bf16.mxu0 0
        %1391 = vmatpush1.bf16.msra.mxu0 0
        %1392 = vmatprep.subr.bf16.mxu0 0
        %1393 = vmatpush1.bf16.msra.mxu0 0
        %1394 = vmatprep.subr.bf16.mxu0 0
        %1395 = vmatpush1.bf16.msra.mxu0 0
        %1396 = vmatprep.mubr.bf16.mxu0 0
        %1397 = vmatmul.mubr.bf16.gmra.mrb[0].mxu0 %v1362
        %v1398 = vpop.f32.mrb[0].mxu0
        %v1399 = vadd.f32 0.0, %v1398
        %v1400 = vpop.f32.mrb[0].mxu0
        %v1401 = vpop.f32.mrb[0].mxu0
        %v1402 = vpop.f32.mrb[0].mxu0
        %1403 = vdwg.mxu0
        %v1405 = vsel %vm512, %v1249, 0
        %1407 = vmatprep.subr.bf16.mxu0 0
        %1408 = vmatpush1.bf16.msra.mxu0 %v782
        %1409 = vmatprep.subr.bf16.mxu0 0
        %1410 = vmatpush1.bf16.msra.mxu0 0
        %1411 = vmatprep.subr.bf16.mxu0 0
        %1412 = vmatpush1.bf16.msra.mxu0 0
        %1413 = vmatprep.subr.bf16.mxu0 0
        %1414 = vmatpush1.bf16.msra.mxu0 0
        %1415 = vmatprep.subr.bf16.mxu0 0
        %1416 = vmatpush1.bf16.msra.mxu0 0
        %1417 = vmatprep.subr.bf16.mxu0 0
        %1418 = vmatpush1.bf16.msra.mxu0 0
        %1419 = vmatprep.subr.bf16.mxu0 0
        %1420 = vmatpush1.bf16.msra.mxu0 0
        %1421 = vmatprep.subr.bf16.mxu0 0
        %1422 = vmatpush1.bf16.msra.mxu0 0
        %1423 = vmatprep.subr.bf16.mxu0 0
        %1424 = vmatpush1.bf16.msra.mxu0 0
        %1425 = vmatprep.subr.bf16.mxu0 0
        %1426 = vmatpush1.bf16.msra.mxu0 0
        %1427 = vmatprep.subr.bf16.mxu0 0
        %1428 = vmatpush1.bf16.msra.mxu0 0
        %1429 = vmatprep.subr.bf16.mxu0 0
        %1430 = vmatpush1.bf16.msra.mxu0 0
        %1431 = vmatprep.subr.bf16.mxu0 0
        %1432 = vmatpush1.bf16.msra.mxu0 0
        %1433 = vmatprep.subr.bf16.mxu0 0
        %1434 = vmatpush1.bf16.msra.mxu0 0
        %1435 = vmatprep.subr.bf16.mxu0 0
        %1436 = vmatpush1.bf16.msra.mxu0 0
        %1437 = vmatprep.subr.bf16.mxu0 0
        %1438 = vmatpush1.bf16.msra.mxu0 0
        %1439 = vmatprep.mubr.bf16.mxu0 0
        %1440 = vmatmul.mubr.bf16.gmra.mrb[0].mxu0 %v1405
        %v1441 = vpop.f32.mrb[0].mxu0
        %v1442 = vadd.f32 %v1399, %v1441
        %v1443 = vpop.f32.mrb[0].mxu0
        %v1444 = vpop.f32.mrb[0].mxu0
        %v1445 = vpop.f32.mrb[0].mxu0
        %1446 = vdwg.mxu0
        %1447 = vrot.lane.b32.xlu0 %v1140, 112
        %v1448 = vpop.permute.xlu0 %1447
        %1449 = vrot.lane.b32.xlu0 %v1140, 80
        %v1450 = vpop.permute.xlu0 %1449
        %v1452 = vsel %vm512, %v1448, 0
        %v1455 = vsel %vm512, %v1450, 0
        %1457 = vmatprep.subr.bf16.mxu0 0
        %1458 = vmatpush1.bf16.xpose.msra.mxu0 %v1455
        %1459 = vmatprep.subr.bf16.mxu0 0
        %1460 = vmatpush1.bf16.xpose.msra.mxu0 0
        %1461 = vmatprep.subr.bf16.mxu0 0
        %1462 = vmatpush1.bf16.xpose.msra.mxu0 0
        %1463 = vmatprep.subr.bf16.mxu0 0
        %1464 = vmatpush1.bf16.xpose.msra.mxu0 0
        %1465 = vmatprep.subr.bf16.mxu0 0
        %1466 = vmatpush1.bf16.xpose.msra.mxu0 0
        %1467 = vmatprep.subr.bf16.mxu0 0
        %1468 = vmatpush1.bf16.xpose.msra.mxu0 0
        %1469 = vmatprep.subr.bf16.mxu0 0
        %1470 = vmatpush1.bf16.xpose.msra.mxu0 0
        %1471 = vmatprep.subr.bf16.mxu0 0
        %1472 = vmatpush1.bf16.xpose.msra.mxu0 0
        %1473 = vmatprep.subr.bf16.mxu0 0
        %1474 = vmatpush1.bf16.xpose.msra.mxu0 0
        %1475 = vmatprep.subr.bf16.mxu0 0
        %1476 = vmatpush1.bf16.xpose.msra.mxu0 0
        %1477 = vmatprep.subr.bf16.mxu0 0
        %1478 = vmatpush1.bf16.xpose.msra.mxu0 0
        %1479 = vmatprep.subr.bf16.mxu0 0
        %1480 = vmatpush1.bf16.xpose.msra.mxu0 0
        %1481 = vmatprep.subr.bf16.mxu0 0
        %1482 = vmatpush1.bf16.xpose.msra.mxu0 0
        %1483 = vmatprep.subr.bf16.mxu0 0
        %1484 = vmatpush1.bf16.xpose.msra.mxu0 0
        %1485 = vmatprep.subr.bf16.mxu0 0
        %1486 = vmatpush1.bf16.xpose.msra.mxu0 0
        %1487 = vmatprep.subr.bf16.mxu0 0
        %1488 = vmatpush1.bf16.xpose.msra.mxu0 0
        %1489 = vmatprep.mubr.bf16.mxu0 0
        %1490 = vmatmul.mubr.bf16.gmra.mrb[0].mxu0 %v1452
        %v1491 = vpop.f32.mrb[0].mxu0
        %v1492 = vadd.f32 %v415, %v1491
        %v1493 = vpop.f32.mrb[0].mxu0
        %v1494 = vpop.f32.mrb[0].mxu0
        %v1495 = vpop.f32.mrb[0].mxu0
        %1496 = vdwg.mxu0
        %v1497 = vsel %vm512, %v1492, -inf
        %1498 = vmax.xlane.f32.xlu0 %v1497
        %v1499 = vpop.xlane.xlu0 %1498
        %v1500 = vsub.f32 %v1492, %v1499
        %v1501 = vmul.f32 %v1500, 1.442695
        %v1502 = vpow.pop %v1501
        %v1503 = vsel %vm512, %v1502, 0.0
        %1504 = vadd.xlane.f32.xlu0 %v1503
        %v1505 = vpop.xlane.xlu0 %1504
        %v1506 = vpack.c.bf16 %v1502, %v1502
        %1507 = vrot.lane.b32.xlu0 %v1140, 48
        %v1508 = vpop.permute.xlu0 %1507
        %v1510 = vsel %vm512, %v1506, 0
        %v1513 = vsel %vm574, %v1508, 0
        %1515 = vmatprep.subr.bf16.mxu0 0
        %1516 = vmatpush1.bf16.msra.mxu0 %v1513
        %1517 = vmatprep.subr.bf16.mxu0 0
        %1518 = vmatpush1.bf16.msra.mxu0 0
        %1519 = vmatprep.subr.bf16.mxu0 0
        %1520 = vmatpush1.bf16.msra.mxu0 0
        %1521 = vmatprep.subr.bf16.mxu0 0
        %1522 = vmatpush1.bf16.msra.mxu0 0
        %1523 = vmatprep.subr.bf16.mxu0 0
        %1524 = vmatpush1.bf16.msra.mxu0 0
        %1525 = vmatprep.subr.bf16.mxu0 0
        %1526 = vmatpush1.bf16.msra.mxu0 0
        %1527 = vmatprep.subr.bf16.mxu0 0
        %1528 = vmatpush1.bf16.msra.mxu0 0
        %1529 = vmatprep.subr.bf16.mxu0 0
        %1530 = vmatpush1.bf16.msra.mxu0 0
        %1531 = vmatprep.subr.bf16.mxu0 0
        %1532 = vmatpush1.bf16.msra.mxu0 0
        %1533 = vmatprep.subr.bf16.mxu0 0
        %1534 = vmatpush1.bf16.msra.mxu0 0
        %1535 = vmatprep.subr.bf16.mxu0 0
        %1536 = vmatpush1.bf16.msra.mxu0 0
        %1537 = vmatprep.subr.bf16.mxu0 0
        %1538 = vmatpush1.bf16.msra.mxu0 0
        %1539 = vmatprep.subr.bf16.mxu0 0
        %1540 = vmatpush1.bf16.msra.mxu0 0
        %1541 = vmatprep.subr.bf16.mxu0 0
        %1542 = vmatpush1.bf16.msra.mxu0 0
        %1543 = vmatprep.subr.bf16.mxu0 0
        %1544 = vmatpush1.bf16.msra.mxu0 0
        %1545 = vmatprep.subr.bf16.mxu0 0
        %1546 = vmatpush1.bf16.msra.mxu0 0
        %1547 = vmatprep.mubr.bf16.mxu0 0
        %1548 = vmatmul.mubr.bf16.gmra.mrb[0].mxu0 %v1510
        %v1549 = vpop.f32.mrb[0].mxu0
        %v1550 = vadd.f32 0.0, %v1549
        %v1551 = vpop.f32.mrb[0].mxu0
        %v1552 = vpop.f32.mrb[0].mxu0
        %v1553 = vpop.f32.mrb[0].mxu0
        %1554 = vdwg.mxu0
        %v1555 = vrcp.pop %v1505
        %v1556 = vmul.f32 %v1550, %v1555
        %v1557 = vpack.c.bf16 %v1556, %v1556
        %v1559 = vsel %vm512, %v1557, 0
        %1561 = vmatprep.subr.bf16.mxu0 0
        %1562 = vmatpush1.bf16.msra.mxu0 %v939
        %1563 = vmatprep.subr.bf16.mxu0 0
        %1564 = vmatpush1.bf16.msra.mxu0 0
        %1565 = vmatprep.subr.bf16.mxu0 0
        %1566 = vmatpush1.bf16.msra.mxu0 0
        %1567 = vmatprep.subr.bf16.mxu0 0
        %1568 = vmatpush1.bf16.msra.mxu0 0
        %1569 = vmatprep.subr.bf16.mxu0 0
        %1570 = vmatpush1.bf16.msra.mxu0 0
        %1571 = vmatprep.subr.bf16.mxu0 0
        %1572 = vmatpush1.bf16.msra.mxu0 0
        %1573 = vmatprep.subr.bf16.mxu0 0
        %1574 = vmatpush1.bf16.msra.mxu0 0
        %1575 = vmatprep.subr.bf16.mxu0 0
        %1576 = vmatpush1.bf16.msra.mxu0 0
        %1577 = vmatprep.subr.bf16.mxu0 0
        %1578 = vmatpush1.bf16.msra.mxu0 0
        %1579 = vmatprep.subr.bf16.mxu0 0
        %1580 = vmatpush1.bf16.msra.mxu0 0
        %1581 = vmatprep.subr.bf16.mxu0 0
        %1582 = vmatpush1.bf16.msra.mxu0 0
        %1583 = vmatprep.subr.bf16.mxu0 0
        %1584 = vmatpush1.bf16.msra.mxu0 0
        %1585 = vmatprep.subr.bf16.mxu0 0
        %1586 = vmatpush1.bf16.msra.mxu0 0
        %1587 = vmatprep.subr.bf16.mxu0 0
        %1588 = vmatpush1.bf16.msra.mxu0 0
        %1589 = vmatprep.subr.bf16.mxu0 0
        %1590 = vmatpush1.bf16.msra.mxu0 0
        %1591 = vmatprep.subr.bf16.mxu0 0
        %1592 = vmatpush1.bf16.msra.mxu0 0
        %1593 = vmatprep.mubr.bf16.mxu0 0
        %1594 = vmatmul.mubr.bf16.gmra.mrb[0].mxu0 %v1559
        %v1595 = vpop.f32.mrb[0].mxu0
        %v1596 = vadd.f32 0.0, %v1595
        %v1597 = vpop.f32.mrb[0].mxu0
        %v1598 = vpop.f32.mrb[0].mxu0
        %v1599 = vpop.f32.mrb[0].mxu0
        %1600 = vdwg.mxu0
        %v1601 = vadd.f32 %v1442, %v1596
        %1602 = vrot.lane.b32.xlu0 %v1140, 104
        %v1603 = vpop.permute.xlu0 %1602
        %1604 = vrot.lane.b32.xlu0 %v1140, 72
        %v1605 = vpop.permute.xlu0 %1604
        %v1607 = vsel %vm512, %v1603, 0
        %v1610 = vsel %vm512, %v1605, 0
        %1612 = vmatprep.subr.bf16.mxu0 0
        %1613 = vmatpush1.bf16.xpose.msra.mxu0 %v1610
        %1614 = vmatprep.subr.bf16.mxu0 0
        %1615 = vmatpush1.bf16.xpose.msra.mxu0 0
        %1616 = vmatprep.subr.bf16.mxu0 0
        %1617 = vmatpush1.bf16.xpose.msra.mxu0 0
        %1618 = vmatprep.subr.bf16.mxu0 0
        %1619 = vmatpush1.bf16.xpose.msra.mxu0 0
        %1620 = vmatprep.subr.bf16.mxu0 0
        %1621 = vmatpush1.bf16.xpose.msra.mxu0 0
        %1622 = vmatprep.subr.bf16.mxu0 0
        %1623 = vmatpush1.bf16.xpose.msra.mxu0 0
        %1624 = vmatprep.subr.bf16.mxu0 0
        %1625 = vmatpush1.bf16.xpose.msra.mxu0 0
        %1626 = vmatprep.subr.bf16.mxu0 0
        %1627 = vmatpush1.bf16.xpose.msra.mxu0 0
        %1628 = vmatprep.subr.bf16.mxu0 0
        %1629 = vmatpush1.bf16.xpose.msra.mxu0 0
        %1630 = vmatprep.subr.bf16.mxu0 0
        %1631 = vmatpush1.bf16.xpose.msra.mxu0 0
        %1632 = vmatprep.subr.bf16.mxu0 0
        %1633 = vmatpush1.bf16.xpose.msra.mxu0 0
        %1634 = vmatprep.subr.bf16.mxu0 0
        %1635 = vmatpush1.bf16.xpose.msra.mxu0 0
        %1636 = vmatprep.subr.bf16.mxu0 0
        %1637 = vmatpush1.bf16.xpose.msra.mxu0 0
        %1638 = vmatprep.subr.bf16.mxu0 0
        %1639 = vmatpush1.bf16.xpose.msra.mxu0 0
        %1640 = vmatprep.subr.bf16.mxu0 0
        %1641 = vmatpush1.bf16.xpose.msra.mxu0 0
        %1642 = vmatprep.subr.bf16.mxu0 0
        %1643 = vmatpush1.bf16.xpose.msra.mxu0 0
        %1644 = vmatprep.mubr.bf16.mxu0 0
        %1645 = vmatmul.mubr.bf16.gmra.mrb[0].mxu0 %v1607
        %v1646 = vpop.f32.mrb[0].mxu0
        %v1647 = vadd.f32 %v415, %v1646
        %v1648 = vpop.f32.mrb[0].mxu0
        %v1649 = vpop.f32.mrb[0].mxu0
        %v1650 = vpop.f32.mrb[0].mxu0
        %1651 = vdwg.mxu0
        %v1652 = vsel %vm512, %v1647, -inf
        %1653 = vmax.xlane.f32.xlu0 %v1652
        %v1654 = vpop.xlane.xlu0 %1653
        %v1655 = vsub.f32 %v1647, %v1654
        %v1656 = vmul.f32 %v1655, 1.442695
        %v1657 = vpow.pop %v1656
        %v1658 = vsel %vm512, %v1657, 0.0
        %1659 = vadd.xlane.f32.xlu0 %v1658
        %v1660 = vpop.xlane.xlu0 %1659
        %v1661 = vpack.c.bf16 %v1657, %v1657
        %1662 = vrot.lane.b32.xlu0 %v1140, 40
        %v1663 = vpop.permute.xlu0 %1662
        %v1665 = vsel %vm512, %v1661, 0
        %v1668 = vsel %vm574, %v1663, 0
        %1670 = vmatprep.subr.bf16.mxu0 0
        %1671 = vmatpush1.bf16.msra.mxu0 %v1668
        %1672 = vmatprep.subr.bf16.mxu0 0
        %1673 = vmatpush1.bf16.msra.mxu0 0
        %1674 = vmatprep.subr.bf16.mxu0 0
        %1675 = vmatpush1.bf16.msra.mxu0 0
        %1676 = vmatprep.subr.bf16.mxu0 0
        %1677 = vmatpush1.bf16.msra.mxu0 0
        %1678 = vmatprep.subr.bf16.mxu0 0
        %1679 = vmatpush1.bf16.msra.mxu0 0
        %1680 = vmatprep.subr.bf16.mxu0 0
        %1681 = vmatpush1.bf16.msra.mxu0 0
        %1682 = vmatprep.subr.bf16.mxu0 0
        %1683 = vmatpush1.bf16.msra.mxu0 0
        %1684 = vmatprep.subr.bf16.mxu0 0
        %1685 = vmatpush1.bf16.msra.mxu0 0
        %1686 = vmatprep.subr.bf16.mxu0 0
        %1687 = vmatpush1.bf16.msra.mxu0 0
        %1688 = vmatprep.subr.bf16.mxu0 0
        %1689 = vmatpush1.bf16.msra.mxu0 0
        %1690 = vmatprep.subr.bf16.mxu0 0
        %1691 = vmatpush1.bf16.msra.mxu0 0
        %1692 = vmatprep.subr.bf16.mxu0 0
        %1693 = vmatpush1.bf16.msra.mxu0 0
        %1694 = vmatprep.subr.bf16.mxu0 0
        %1695 = vmatpush1.bf16.msra.mxu0 0
        %1696 = vmatprep.subr.bf16.mxu0 0
        %1697 = vmatpush1.bf16.msra.mxu0 0
        %1698 = vmatprep.subr.bf16.mxu0 0
        %1699 = vmatpush1.bf16.msra.mxu0 0
        %1700 = vmatprep.subr.bf16.mxu0 0
        %1701 = vmatpush1.bf16.msra.mxu0 0
        %1702 = vmatprep.mubr.bf16.mxu0 0
        %1703 = vmatmul.mubr.bf16.gmra.mrb[0].mxu0 %v1665
        %v1704 = vpop.f32.mrb[0].mxu0
        %v1705 = vadd.f32 0.0, %v1704
        %v1706 = vpop.f32.mrb[0].mxu0
        %v1707 = vpop.f32.mrb[0].mxu0
        %v1708 = vpop.f32.mrb[0].mxu0
        %1709 = vdwg.mxu0
        %v1710 = vrcp.pop %v1660
        %v1711 = vmul.f32 %v1705, %v1710
        %v1712 = vpack.c.bf16 %v1711, %v1711
        %v1714 = vsel %vm512, %v1712, 0
        %1716 = vmatprep.subr.bf16.mxu0 0
        %1717 = vmatpush1.bf16.msra.mxu0 %v1097
        %1718 = vmatprep.subr.bf16.mxu0 0
        %1719 = vmatpush1.bf16.msra.mxu0 0
        %1720 = vmatprep.subr.bf16.mxu0 0
        %1721 = vmatpush1.bf16.msra.mxu0 0
        %1722 = vmatprep.subr.bf16.mxu0 0
        %1723 = vmatpush1.bf16.msra.mxu0 0
        %1724 = vmatprep.subr.bf16.mxu0 0
        %1725 = vmatpush1.bf16.msra.mxu0 0
        %1726 = vmatprep.subr.bf16.mxu0 0
        %1727 = vmatpush1.bf16.msra.mxu0 0
        %1728 = vmatprep.subr.bf16.mxu0 0
        %1729 = vmatpush1.bf16.msra.mxu0 0
        %1730 = vmatprep.subr.bf16.mxu0 0
        %1731 = vmatpush1.bf16.msra.mxu0 0
        %1732 = vmatprep.subr.bf16.mxu0 0
        %1733 = vmatpush1.bf16.msra.mxu0 0
        %1734 = vmatprep.subr.bf16.mxu0 0
        %1735 = vmatpush1.bf16.msra.mxu0 0
        %1736 = vmatprep.subr.bf16.mxu0 0
        %1737 = vmatpush1.bf16.msra.mxu0 0
        %1738 = vmatprep.subr.bf16.mxu0 0
        %1739 = vmatpush1.bf16.msra.mxu0 0
        %1740 = vmatprep.subr.bf16.mxu0 0
        %1741 = vmatpush1.bf16.msra.mxu0 0
        %1742 = vmatprep.subr.bf16.mxu0 0
        %1743 = vmatpush1.bf16.msra.mxu0 0
        %1744 = vmatprep.subr.bf16.mxu0 0
        %1745 = vmatpush1.bf16.msra.mxu0 0
        %1746 = vmatprep.subr.bf16.mxu0 0
        %1747 = vmatpush1.bf16.msra.mxu0 0
        %1748 = vmatprep.mubr.bf16.mxu0 0
        %1749 = vmatmul.mubr.bf16.gmra.mrb[0].mxu0 %v1714
        %v1750 = vpop.f32.mrb[0].mxu0
        %v1751 = vadd.f32 0.0, %v1750
        %v1752 = vpop.f32.mrb[0].mxu0
        %v1753 = vpop.f32.mrb[0].mxu0
        %v1754 = vpop.f32.mrb[0].mxu0
        %1755 = vdwg.mxu0
        %v1756 = vadd.f32 %v1601, %v1751
        %v1757 = vadd.f32 %v1139, %v413
        %v1758 = vadd.f32 %v1756, %v414
        %v1759 = vld [vmem:[%s374] sm:$0x1]
        %v1760 = vmul.f32 %v1757, %v1757
        %v1761 = vmul.f32 %v1758, %v1758
        %v1762 = vsel %vm419, %v1760, 0.0
        %1763 = vadd.xlane.f32.xlu0 %v1762
        %v1764 = vpop.xlane.xlu0 %1763
        %v1765 = vsel %vm419, %v1761, 0.0
        %1766 = vadd.xlane.f32.xlu0 %v1765
        %v1767 = vpop.xlane.xlu0 %1766
        %v1768 = vmul.f32 %v1764, %v426
        %v1769 = vmul.f32 %v1767, %v426
        %v1770 = vadd.f32 %v1768, 1e-05
        %v1771 = vadd.f32 %v1769, 1e-05
        %v1772 = vrsqrt.pop %v1770
        %v1773 = vrsqrt.pop %v1771
        %v1774 = vmul.f32 %v1757, %v1772
        %v1775 = vmul.f32 %v1758, %v1773
        %v1777 = vlaneseq
        %v1778 = vshrl.u32 %v1777, 7
        %v1779 = vsub.s32 0, %v1778
        %v1780 = vrot.slane %v1759, %v1779
        %v1782 = vmul.f32 %v1774, %v1780
        %v1783 = vmul.f32 %v1775, %v1780
        %v1784 = vpack.c.bf16 %v1783, %v1782
        %v1785 = vld [vmem:[%s389] sm:$0xf]
        %v1786 = vld [vmem:[%s389 + $0x4] sm:$0xf]
        %v1787 = vld [vmem:[%s389 + $0x8] sm:$0xf]
        %v1788 = vld [vmem:[%s389 + $0xc] sm:$0xf]
        %v1793 = vunpack.c.l.b16 %v1785
        %v1794 = vunpack.c.l.b16 %v1786
        %v1795 = vunpack.c.l.b16 %v1787
        %v1796 = vunpack.c.l.b16 %v1788
        %v1797 = vpack.c.b16 %v1794, %v1793
        %v1798 = vpack.c.b16 %v1796, %v1795
        %v1802 = vsel %vm419, %v1784, 0
        %1804 = vmatprep.subr.bf16.mxu0 0
        %1805 = vmatpush1.bf16.msra.mxu0 %v1797
        %1806 = vmatprep.subr.bf16.mxu0 0
        %1807 = vmatpush1.bf16.msra.mxu0 %v1798
        %1808 = vmatprep.subr.bf16.mxu0 0
        %1809 = vmatpush1.bf16.msra.mxu0 0
        %1810 = vmatprep.subr.bf16.mxu0 0
        %1811 = vmatpush1.bf16.msra.mxu0 0
        %1812 = vmatprep.subr.bf16.mxu0 0
        %1813 = vmatpush1.bf16.msra.mxu0 0
        %1814 = vmatprep.subr.bf16.mxu0 0
        %1815 = vmatpush1.bf16.msra.mxu0 0
        %1816 = vmatprep.subr.bf16.mxu0 0
        %1817 = vmatpush1.bf16.msra.mxu0 0
        %1818 = vmatprep.subr.bf16.mxu0 0
        %1819 = vmatpush1.bf16.msra.mxu0 0
        %1820 = vmatprep.subr.bf16.mxu0 0
        %1821 = vmatpush1.bf16.msra.mxu0 0
        %1822 = vmatprep.subr.bf16.mxu0 0
        %1823 = vmatpush1.bf16.msra.mxu0 0
        %1824 = vmatprep.subr.bf16.mxu0 0
        %1825 = vmatpush1.bf16.msra.mxu0 0
        %1826 = vmatprep.subr.bf16.mxu0 0
        %1827 = vmatpush1.bf16.msra.mxu0 0
        %1828 = vmatprep.subr.bf16.mxu0 0
        %1829 = vmatpush1.bf16.msra.mxu0 0
        %1830 = vmatprep.subr.bf16.mxu0 0
        %1831 = vmatpush1.bf16.msra.mxu0 0
        %1832 = vmatprep.subr.bf16.mxu0 0
        %1833 = vmatpush1.bf16.msra.mxu0 0
        %1834 = vmatprep.subr.bf16.mxu0 0
        %1835 = vmatpush1.bf16.msra.mxu0 0
        %1836 = vmatprep.mubr.bf16.mxu0 0
        %1837 = vmatmul.mubr.bf16.gmra.mrb[0].mxu0 %v1802
        %v1838 = vpop.f32.mrb[0].mxu0
        %v1839 = vadd.f32 0.0, %v1838
        %v1840 = vpop.f32.mrb[0].mxu0
        %v1841 = vpop.f32.mrb[0].mxu0
        %v1842 = vadd.f32 0.0, %v1841
        %v1843 = vpop.f32.mrb[0].mxu0
        %1844 = vdwg.mxu0
        %v1845 = vxor.u32 %v1839, 2147483648
        %v1846 = vxor.u32 %v1842, 2147483648
        %v1847 = vmul.f32 %v1845, 1.442695
        %v1848 = vpow.pop %v1847
        %v1849 = vmul.f32 %v1846, 1.442695
        %v1850 = vpow.pop %v1849
        %v1851 = vadd.f32 %v1848, 1.0
        %v1852 = vadd.f32 %v1850, 1.0
        %v1853 = vrcp.pop %v1851
        %v1854 = vmul.f32 1.0, %v1853
        %v1855 = vrcp.pop %v1852
        %v1856 = vmul.f32 1.0, %v1855
        %v1857 = vmul.f32 %v1839, %v1854
        %v1858 = vmul.f32 %v1842, %v1856
        %1861 = vrot.lane.b32.xlu0 %v1839, 64
        %v1862 = vpop.permute.xlu0 %1861
        %1863 = vrot.lane.b32.xlu0 %v1842, 64
        %v1864 = vpop.permute.xlu0 %1863
        %v1867 = vmul.f32 %v1857, %v1862
        %v1868 = vmul.f32 %v1858, %v1864
        %v1869 = vpack.c.bf16 %v1868, %v1867
        %v1870 = vld [vmem:[%s394] sm:$0xf]
        %v1871 = vld [vmem:[%s394 + $0x4] sm:$0xf]
        %v1872 = vld [vmem:[%s394 + $0x8] sm:$0xf]
        %v1873 = vld [vmem:[%s394 + $0xc] sm:$0xf]
        %v1874 = vld [vmem:[%s394 + $0x10] sm:$0xf]
        %v1875 = vld [vmem:[%s394 + $0x14] sm:$0xf]
        %v1876 = vld [vmem:[%s394 + $0x18] sm:$0xf]
        %v1877 = vld [vmem:[%s394 + $0x1c] sm:$0xf]
        %v1886 = vunpack.c.l.b16 %v1870
        %v1887 = vunpack.c.l.b16 %v1871
        %v1888 = vunpack.c.l.b16 %v1872
        %v1889 = vunpack.c.l.b16 %v1873
        %v1890 = vunpack.c.l.b16 %v1874
        %v1891 = vunpack.c.l.b16 %v1875
        %v1892 = vunpack.c.l.b16 %v1876
        %v1893 = vunpack.c.l.b16 %v1877
        %v1894 = vpack.c.b16 %v1887, %v1886
        %v1895 = vpack.c.b16 %v1889, %v1888
        %v1896 = vpack.c.b16 %v1891, %v1890
        %v1897 = vpack.c.b16 %v1893, %v1892
        %vm1902 = vcmask 523264
        %v1904 = vsel %vm1902, %v1869, 0
        %1906 = vmatprep.subr.bf16.mxu0 0
        %1907 = vmatpush1.bf16.msra.mxu0 %v1894
        %1908 = vmatprep.subr.bf16.mxu0 0
        %1909 = vmatpush1.bf16.msra.mxu0 %v1895
        %1910 = vmatprep.subr.bf16.mxu0 0
        %1911 = vmatpush1.bf16.msra.mxu0 %v1896
        %1912 = vmatprep.subr.bf16.mxu0 0
        %1913 = vmatpush1.bf16.msra.mxu0 %v1897
        %1914 = vmatprep.subr.bf16.mxu0 0
        %1915 = vmatpush1.bf16.msra.mxu0 0
        %1916 = vmatprep.subr.bf16.mxu0 0
        %1917 = vmatpush1.bf16.msra.mxu0 0
        %1918 = vmatprep.subr.bf16.mxu0 0
        %1919 = vmatpush1.bf16.msra.mxu0 0
        %1920 = vmatprep.subr.bf16.mxu0 0
        %1921 = vmatpush1.bf16.msra.mxu0 0
        %1922 = vmatprep.subr.bf16.mxu0 0
        %1923 = vmatpush1.bf16.msra.mxu0 0
        %1924 = vmatprep.subr.bf16.mxu0 0
        %1925 = vmatpush1.bf16.msra.mxu0 0
        %1926 = vmatprep.subr.bf16.mxu0 0
        %1927 = vmatpush1.bf16.msra.mxu0 0
        %1928 = vmatprep.subr.bf16.mxu0 0
        %1929 = vmatpush1.bf16.msra.mxu0 0
        %1930 = vmatprep.subr.bf16.mxu0 0
        %1931 = vmatpush1.bf16.msra.mxu0 0
        %1932 = vmatprep.subr.bf16.mxu0 0
        %1933 = vmatpush1.bf16.msra.mxu0 0
        %1934 = vmatprep.subr.bf16.mxu0 0
        %1935 = vmatpush1.bf16.msra.mxu0 0
        %1936 = vmatprep.subr.bf16.mxu0 0
        %1937 = vmatpush1.bf16.msra.mxu0 0
        %1938 = vmatprep.mubr.bf16.mxu0 0
        %1939 = vmatmul.mubr.bf16.gmra.mrb[0].mxu0 %v1904
        %v1940 = vpop.f32.mrb[0].mxu0
        %v1941 = vadd.f32 %v1757, %v1940
        %v1942 = vpop.f32.mrb[0].mxu0
        %v1943 = vpop.f32.mrb[0].mxu0
        %v1944 = vadd.f32 %v1758, %v1943
        %v1945 = vpop.f32.mrb[0].mxu0
        %1946 = vdwg.mxu0
        %1947 = vst.msk [vmem:[#allocation2] sm:$0xff] %vm419, %v1941
        %1948 = vst.msk [vmem:[#allocation2 + $0x8] sm:$0xff] %vm419, %v1944
        %p1949 = scmp.eq.s32.totalorder %s21, 1
        // Predicated region
        $region61: #{tpu_custom_call.1} parent=51 // pred_check
          %p1950 = pneg %p1949
        $region62: #{tpu_custom_call.1} parent=51 // pred_check_branch
          %1952 = sbr.rel (%p1950) target = $region64
        $region63: #{tpu_custom_call.1} parent=51 // pred_region
          %v1953 = vld [vmem:[%s7] sm:$0x1]
          %v1954 = vmul.f32 %v1941, %v1941
          %v1955 = vmul.f32 %v1944, %v1944
          %v1956 = vsel %vm419, %v1954, 0.0
          %1957 = vadd.xlane.f32.xlu0 %v1956
          %v1958 = vpop.xlane.xlu0 %1957
          %v1959 = vsel %vm419, %v1955, 0.0
          %1960 = vadd.xlane.f32.xlu0 %v1959
          %v1961 = vpop.xlane.xlu0 %1960
          %v1962 = vmul.f32 %v1958, %v426
          %v1963 = vmul.f32 %v1961, %v426
          %v1964 = vadd.f32 %v1962, 1e-05
          %v1965 = vadd.f32 %v1963, 1e-05
          %v1966 = vrsqrt.pop %v1964
          %v1967 = vrsqrt.pop %v1965
          %v1968 = vmul.f32 %v1941, %v1966
          %v1969 = vmul.f32 %v1944, %v1967
          %v1971 = vlaneseq
          %v1972 = vshrl.u32 %v1971, 7
          %v1973 = vsub.s32 0, %v1972
          %v1974 = vrot.slane %v1953, %v1973
          %v1976 = vmul.f32 %v1968, %v1974
          %v1977 = vmul.f32 %v1969, %v1974
          %v1978 = vpack.c.bf16 %v1977, %v1976
          %v1980 = vunpack.c.l.b16 %v1978
          %v1981 = vunpack.c.h.b16 %v1978
          %v1982 = vpack.c.b16 %v1980, %v1980
          %v1983 = vpack.c.b16 %v1981, %v1981
          %vm1986 = vcmask 257024
          %1987 = vst.msk [vmem:[#allocation7] sm:$0xf] %vm1986, %v1982
          %1988 = vst.msk [vmem:[#allocation7 + $0x4] sm:$0xf] %vm1986, %v1983
        $region64: #{tpu_custom_call.1} parent=51 // pred_fallthru
          _
        // Predicated region
        $region65: #{tpu_custom_call.1} parent=51 // pred_check
          %p1989 = pneg %p232
        $region66: #{tpu_custom_call.1} parent=51 // pred_check_branch
          %1991 = sbr.rel (%p1989) target = $region68
        $region67: #{tpu_custom_call.1} parent=51 // pred_region
          %s1993 = ssub.s32 128, 128
          %1994 = vsyncadd [#allocation6], %s1993
          %s1995 = sshll.u32 [#allocation7], 4
          %s1996 = int_to_ptr.vmem [resolvable:$true] %s1995
          %2001 = dma.vmem_to_hbm [thread:$0]  %s1996, 128, %s8, [#allocation6], 64, 64, 4
        $region68: #{tpu_custom_call.1} parent=51 // pred_fallthru
          _
        // Predicated region
        $region69: #{tpu_custom_call.1} parent=51 // pred_check
          %p2002 = pneg %p232
        $region70: #{tpu_custom_call.1} parent=51 // pred_check_branch
          %2004 = sbr.rel (%p2002) target = $region72
        $region71: #{tpu_custom_call.1} parent=51 // pred_region
          %2005 = dma.done [#allocation6], 128
        $region72: #{tpu_custom_call.1} parent=51 // pred_fallthru
          _
      $region52: #{tpu_custom_call.1} parent=5 // pred_fallthru
        _
      %p2006 = scmp.le.s32.totalorder 2, %s16
      // Predicated region
      $region73: #{tpu_custom_call.1} parent=5 // pred_check
        %p2007 = pneg %p2006
      $region74: #{tpu_custom_call.1} parent=5 // pred_check_branch
        %2009 = sbr.rel (%p2007) target = $region76
      $region75: #{tpu_custom_call.1} parent=5 // pred_region
        %s2010 = ssub.s32 %s16, 2
      $region76: #{tpu_custom_call.1} parent=5 // pred_fallthru
        _
    $region6: #{tpu_custom_call.1} parent=1 // loop_footer
      %s20 = sadd.s32 1, %s16
    $region7: #{tpu_custom_call.1} parent=1 // loop_footer_branch
      %15 = sbr.rel target = $region3
    $region8: #{tpu_custom_call.1} parent=1 // loop_exit
      _
    %2011 = vsyncpa [#allocation5], 1
    %s2012 = scalar_lea.sflag [#allocation5], 1
    %2013 = vsyncpa %s2012, 1
    %2014 = vsyncpa [#allocation6], 1
    %s2015 = scalar_lea.sflag [#allocation6], 1
    %2016 = vsyncpa %s2015, 1

</llo_original>
